<compile_context>
chip_gen: v6e
topology: v6e:2x2x1
jax: 0.10.0
libtpu: 0.0.40
codegen_flags: <defaults>
</compile_context>

<pallas_src>
import types

import jax
import jax.numpy as jnp
from jax import lax
from jax.experimental import pallas as pl
from jax.experimental.pallas import tpu as pltpu


def _vmem():
    return pl.BlockSpec(memory_space=pltpu.MemorySpace.VMEM)


def _make_fused_kernel(cfg):
    B, S = cfg["B"], cfg["S"]
    K1, K2, P = cfg["K1"], cfg["K2"], cfg["P"]
    H, T = cfg["H"], cfg["T"]
    use_conv2, use_ln = cfg["use_conv2"], cfg["use_ln"]

    def kernel(*refs):
        it = iter(refs)
        x_ref = next(it)          # (B*S + pad, E)  flattened embeddings, zero tail pad
        len_ref = next(it)        # (B, 1) int32    valid LSTM lengths per batch
        w1_ref = next(it)         # (K1, E, F1)     per-tap conv1 weights
        aff1_ref = next(it)       # (3, F1)         rows: conv bias, bn scale, bn shift
        if use_conv2:
            w2_ref = next(it)     # (K2, F1, F2)
            aff2_ref = next(it)   # (3, F2)
        wih_ref = next(it)        # (F, 4H)
        whh_ref = next(it)        # (H, 4H)
        lb_ref = next(it)         # (1, 4H)
        h0_ref = next(it)         # (B, H)
        c0_ref = next(it)         # (B, H)
        ln_ref = next(it)         # (2, H)          rows: gamma, beta
        fcw_ref = next(it)        # (H, ENC_pad)
        fcb_ref = next(it)        # (1, ENC_pad)
        o_ref = next(it)          # (B, ENC_pad)

        # ---- conv1 as K1 shifted matmuls + ReLU + folded eval BatchNorm ----
        x = x_ref[...]
        w1 = w1_ref[...]
        aff1 = aff1_ref[...]
        n1 = B * S + (K2 - 1 if use_conv2 else 0)
        acc = jnp.dot(x[0:n1], w1[0], preferred_element_type=jnp.float32)
        for k in range(1, K1):
            acc += jnp.dot(x[k:k + n1], w1[k], preferred_element_type=jnp.float32)
        y = jnp.maximum(acc + aff1[0:1, :], 0.0) * aff1[1:2, :] + aff1[2:3, :]

        # ---- conv2 + ReLU + folded eval BatchNorm ----
        if use_conv2:
            w2 = w2_ref[...]
            aff2 = aff2_ref[...]
            n2 = B * S
            acc2 = jnp.dot(y[0:n2], w2[0], preferred_element_type=jnp.float32)
            for k in range(1, K2):
                acc2 += jnp.dot(y[k:k + n2], w2[k], preferred_element_type=jnp.float32)
            y = jnp.maximum(acc2 + aff2[0:1, :], 0.0) * aff2[1:2, :] + aff2[2:3, :]

        # ---- max-pool (window P), gathered into a time-major (T*B, F) slab ----
        # Valid conv rows for batch b live at flat rows [b*S, b*S + L_valid);
        # only rows within that range are ever read here.
        rows = []
        for t in range(T):
            for b in range(B):
                base = b * S + t * P
                m = y[base:base + 1, :]
                for j in range(1, P):
                    m = jnp.maximum(m, y[base + j:base + j + 1, :])
                rows.append(m)
        pooled = jnp.concatenate(rows, axis=0)                # (T*B, F)

        # ---- hoisted input projection: one matmul covers every time step ----
        gates_x = (jnp.dot(pooled, wih_ref[...], preferred_element_type=jnp.float32)
                   + lb_ref[...])                              # (T*B, 4H)

        # ---- unrolled LSTM recurrence with packed-sequence freeze ----
        whh = whh_ref[...]
        lens = len_ref[...]                                    # (B, 1) int32
        h = h0_ref[...]
        c = c0_ref[...]
        for t in range(T):
            g = gates_x[t * B:(t + 1) * B, :] + jnp.dot(
                h, whh, preferred_element_type=jnp.float32)    # (B, 4H)
            sg = jax.nn.sigmoid(g)                             # full 4H-lane tile at once
            tg = jnp.tanh(g)
            i_g = sg[:, 0:H]
            f_g = sg[:, H:2 * H]
            g_g = tg[:, 2 * H:3 * H]
            o_g = sg[:, 3 * H:4 * H]
            c_new = f_g * c + i_g * g_g
            h_new = o_g * jnp.tanh(c_new)
            live = lens > t                                    # freeze past valid length
            h = jnp.where(live, h_new, h)
            c = jnp.where(live, c_new, c)

        # ---- optional LayerNorm + fc_encoder (lane-padded, lane-dense store) ----
        if use_ln:
            ln = ln_ref[...]
            mu = jnp.mean(h, axis=-1, keepdims=True)
            var = jnp.mean((h - mu) ** 2, axis=-1, keepdims=True)
            h = (h - mu) * lax.rsqrt(var + 1e-5) * ln[0:1, :] + ln[1:2, :]
        o_ref[...] = (jnp.dot(h, fcw_ref[...], preferred_element_type=jnp.float32)
                      + fcb_ref[...])

    return kernel


def conv_lstm_forward(params, hp, input_seqs):
    B, S = input_seqs.shape
    E = hp.word_embedding_size
    K1 = hp.nb_conv1_kernel_size
    K2 = hp.nb_conv2_kernel_size
    P = hp.nb_max_pool_size
    H = hp.nb_lstm_units
    ENC = hp.encoding_dim
    use_conv2 = K2 > 1
    use_ln = bool(hp.nb_lstm_layernorm)

    L1 = S - K1 + 1
    L2 = L1 - (K2 - 1) if use_conv2 else L1
    T = L2 // P
    ENC_pad = ((ENC + 127) // 128) * 128

    # valid lengths through conv / pool (pack_padded_sequence semantics)
    X_lengths = jnp.sum(input_seqs > 0, axis=1).astype(jnp.int32)
    X_lengths = X_lengths - (K1 - 1) - ((K2 - 1) if use_conv2 else 0)
    X_lengths = jnp.maximum(X_lengths // P, 1).reshape(B, 1)

    # embedding gather (padding_idx=0 row is zero), flatten, zero tail pad so the
    # in-kernel shifted slices never read out of bounds.
    x = jnp.take(params["emb"], input_seqs, axis=0).reshape(B * S, E)
    pad_rows = (K1 - 1) + ((K2 - 1) if use_conv2 else 0)
    x = jnp.concatenate([x, jnp.zeros((pad_rows, E), jnp.float32)], axis=0)

    def conv_operands(w, b, g, beta, rm, rv, use_bn):
        wt = jnp.transpose(w, (2, 1, 0))                       # (K, Cin, Cout)
        if use_bn:                                             # eval BN -> affine epilogue
            scale = g * lax.rsqrt(rv + 1e-5)
            shift = beta - rm * scale
        else:
            scale = jnp.ones_like(b)
            shift = jnp.zeros_like(b)
        return wt, jnp.stack([b, scale, shift], axis=0)        # (3, Cout)

    w1t, aff1 = conv_operands(params["conv1_w"], params["conv1_b"],
                              params["bn1_g"], params["bn1_b"],
                              params["bn1_rm"], params["bn1_rv"],
                              bool(hp.nb_conv1_batchnorm))
    operands = [x, X_lengths, w1t, aff1]
    if use_conv2:
        w2t, aff2 = conv_operands(params["conv2_w"], params["conv2_b"],
                                  params["bn2_g"], params["bn2_b"],
                                  params["bn2_rm"], params["bn2_rv"],
                                  bool(hp.nb_conv2_batchnorm))
        operands += [w2t, aff2]

    fcw = jnp.zeros((H, ENC_pad), jnp.float32).at[:, :ENC].set(jnp.transpose(params["fc_w"]))
    fcb = jnp.zeros((1, ENC_pad), jnp.float32).at[:, :ENC].set(params["fc_b"].reshape(1, ENC))

    operands += [
        jnp.transpose(params["lstm_w_ih"]),                    # (F, 4H), gate order i,f,g,o
        jnp.transpose(params["lstm_w_hh"]),                    # (H, 4H)
        (params["lstm_b_ih"] + params["lstm_b_hh"]).reshape(1, 4 * H),
        params["h0"], params["c0"],
        jnp.stack([params["ln_g"], params["ln_b"]], axis=0),   # (2, H)
        fcw, fcb,
    ]

    cfg = dict(B=B, S=S, K1=K1, K2=K2, P=P, H=H, T=T,
               use_conv2=use_conv2, use_ln=use_ln)
    out = pl.pallas_call(
        _make_fused_kernel(cfg),
        out_shape=jax.ShapeDtypeStruct((B, ENC_pad), jnp.float32),
        in_specs=[_vmem()] * len(operands),
        out_specs=_vmem(),
    )(*operands)
    return out[:, :ENC]
    # TODO(synk): bidirectional LSTM and train-mode Dropout / batch-stat BatchNorm are
    # not modeled (eval-mode, unidirectional semantics only).


# ---------------------------------------- main ------------------------------------------
if __name__ == "__main__":
    hp = types.SimpleNamespace(
        vocab_size=11,
        word_embedding_size=16,
        nb_conv1_filters=32, nb_conv1_kernel_size=3, nb_conv1_dropout=0.2, nb_conv1_batchnorm=True,
        nb_conv2_filters=32, nb_conv2_kernel_size=3, nb_conv2_batchnorm=True,
        nb_max_pool_size=2,
        nb_lstm_units=32, nb_lstm_bidirectional=False,
        nb_lstm_hidden_dropout=0.0, nb_lstm_layernorm=True,
        encoding_dim=16,
    )
    B, S = 2, 16
    E, F1, F2, H, ENC = (hp.word_embedding_size, hp.nb_conv1_filters,
                         hp.nb_conv2_filters, hp.nb_lstm_units, hp.encoding_dim)
    K1, K2 = hp.nb_conv1_kernel_size, hp.nb_conv2_kernel_size

    key = jax.random.PRNGKey(0)
    ks = jax.random.split(key, 24)

    emb = 0.1 * jax.random.normal(ks[0], (hp.vocab_size + 1, E), jnp.float32)
    emb = emb.at[0].set(0.0)                                              # padding_idx=0

    params = dict(
        emb=emb,
        conv1_w=0.1 * jax.random.normal(ks[1], (F1, E, K1), jnp.float32),
        conv1_b=0.1 * jax.random.normal(ks[2], (F1,), jnp.float32),
        bn1_g=1.0 + 0.1 * jax.random.normal(ks[3], (F1,), jnp.float32),
        bn1_b=0.1 * jax.random.normal(ks[4], (F1,), jnp.float32),
        bn1_rm=0.05 * jax.random.normal(ks[5], (F1,), jnp.float32),
        bn1_rv=1.0 + 0.1 * jnp.abs(jax.random.normal(ks[6], (F1,), jnp.float32)),
        conv2_w=0.1 * jax.random.normal(ks[7], (F2, F1, K2), jnp.float32),
        conv2_b=0.1 * jax.random.normal(ks[8], (F2,), jnp.float32),
        bn2_g=1.0 + 0.1 * jax.random.normal(ks[9], (F2,), jnp.float32),
        bn2_b=0.1 * jax.random.normal(ks[10], (F2,), jnp.float32),
        bn2_rm=0.05 * jax.random.normal(ks[11], (F2,), jnp.float32),
        bn2_rv=1.0 + 0.1 * jnp.abs(jax.random.normal(ks[12], (F2,), jnp.float32)),
        lstm_w_ih=0.1 * jax.random.normal(ks[13], (4 * H, F2), jnp.float32),
        lstm_w_hh=0.1 * jax.random.normal(ks[14], (4 * H, H), jnp.float32),
        lstm_b_ih=0.1 * jax.random.normal(ks[15], (4 * H,), jnp.float32),
        lstm_b_hh=0.1 * jax.random.normal(ks[16], (4 * H,), jnp.float32),
        # init_hidden(): torch.randn -> deterministic normal draws (1 direction, per-batch).
        h0=jax.random.normal(ks[17], (B, H), jnp.float32),
        c0=jax.random.normal(ks[18], (B, H), jnp.float32),
        ln_g=1.0 + 0.1 * jax.random.normal(ks[19], (H,), jnp.float32),
        ln_b=0.1 * jax.random.normal(ks[20], (H,), jnp.float32),
        fc_w=0.1 * jax.random.normal(ks[21], (ENC, H), jnp.float32),
        fc_b=0.1 * jax.random.normal(ks[22], (ENC,), jnp.float32),
    )

    # input token ids in [1, vocab]; batch element 1 gets trailing padding (id 0).
    tokens = jax.random.randint(ks[23], (B, S), 1, hp.vocab_size + 1, dtype=jnp.int32)
    tokens = tokens.at[1, 11:].set(0)

    fwd = jax.jit(lambda p, t: conv_lstm_forward(p, hp, t))
    out = jax.block_until_ready(fwd(params, tokens))

    assert out.shape == (B, ENC), out.shape
    assert bool(jnp.all(jnp.isfinite(out)))
    print("KERNEL_OK")
</pallas_src>

<mosaic_0001>
module attributes {stable_mosaic.version = 11 : i64} {
  func.func @kernel(%arg0: memref<36x16xf32, #tpu.memory_space<vmem>>, %arg1: memref<2x1xi32, #tpu.memory_space<vmem>>, %arg2: memref<3x16x32xf32, #tpu.memory_space<vmem>>, %arg3: memref<3x32xf32, #tpu.memory_space<vmem>>, %arg4: memref<3x32x32xf32, #tpu.memory_space<vmem>>, %arg5: memref<3x32xf32, #tpu.memory_space<vmem>>, %arg6: memref<32x128xf32, #tpu.memory_space<vmem>>, %arg7: memref<32x128xf32, #tpu.memory_space<vmem>>, %arg8: memref<1x128xf32, #tpu.memory_space<vmem>>, %arg9: memref<2x32xf32, #tpu.memory_space<vmem>>, %arg10: memref<2x32xf32, #tpu.memory_space<vmem>>, %arg11: memref<2x32xf32, #tpu.memory_space<vmem>>, %arg12: memref<32x128xf32, #tpu.memory_space<vmem>>, %arg13: memref<1x128xf32, #tpu.memory_space<vmem>>, %arg14: memref<2x128xf32, #tpu.memory_space<vmem>>) attributes {dimension_semantics = [], scalar_prefetch = 0 : i64, scratch_operands = 0 : i64, tpu.core_type = #tpu.core_type<tc>} {
    %c0 = arith.constant 0 : index
    %c0_0 = arith.constant 0 : index
    %0 = vector.load %arg0[%c0, %c0_0] : memref<36x16xf32, #tpu.memory_space<vmem>>, vector<36x16xf32>
    %c0_1 = arith.constant 0 : index
    %c0_2 = arith.constant 0 : index
    %c0_3 = arith.constant 0 : index
    %1 = vector.load %arg2[%c0_1, %c0_2, %c0_3] : memref<3x16x32xf32, #tpu.memory_space<vmem>>, vector<3x16x32xf32>
    %c0_4 = arith.constant 0 : index
    %c0_5 = arith.constant 0 : index
    %2 = vector.load %arg3[%c0_4, %c0_5] : memref<3x32xf32, #tpu.memory_space<vmem>>, vector<3x32xf32>
    %3 = vector.extract_strided_slice %0 {offsets = [0, 0], sizes = [34, 16], strides = [1, 1]} : vector<36x16xf32> to vector<34x16xf32>
    %4 = vector.extract_strided_slice %1 {offsets = [0, 0, 0], sizes = [1, 16, 32], strides = [1, 1, 1]} : vector<3x16x32xf32> to vector<1x16x32xf32>
    %5 = vector.shape_cast %4 : vector<1x16x32xf32> to vector<16x32xf32>
    %cst = arith.constant dense<0.000000e+00> : vector<34x32xf32>
    %6 = tpu.matmul %3, %5, %cst {dimension_numbers = #tpu.dot_dimension_numbers<[1], [0], [0], [1], [0, 0, 1, 1], [], []>} : vector<34x16xf32>, vector<16x32xf32>, vector<34x32xf32> -> vector<34x32xf32>
    %7 = vector.extract_strided_slice %0 {offsets = [1, 0], sizes = [34, 16], strides = [1, 1]} : vector<36x16xf32> to vector<34x16xf32>
    %8 = vector.extract_strided_slice %1 {offsets = [1, 0, 0], sizes = [1, 16, 32], strides = [1, 1, 1]} : vector<3x16x32xf32> to vector<1x16x32xf32>
    %9 = vector.shape_cast %8 : vector<1x16x32xf32> to vector<16x32xf32>
    %cst_6 = arith.constant dense<0.000000e+00> : vector<34x32xf32>
    %10 = tpu.matmul %7, %9, %cst_6 {dimension_numbers = #tpu.dot_dimension_numbers<[1], [0], [0], [1], [0, 0, 1, 1], [], []>} : vector<34x16xf32>, vector<16x32xf32>, vector<34x32xf32> -> vector<34x32xf32>
    %11 = arith.addf %6, %10 : vector<34x32xf32>
    %12 = vector.extract_strided_slice %0 {offsets = [2, 0], sizes = [34, 16], strides = [1, 1]} : vector<36x16xf32> to vector<34x16xf32>
    %13 = vector.extract_strided_slice %1 {offsets = [2, 0, 0], sizes = [1, 16, 32], strides = [1, 1, 1]} : vector<3x16x32xf32> to vector<1x16x32xf32>
    %14 = vector.shape_cast %13 : vector<1x16x32xf32> to vector<16x32xf32>
    %cst_7 = arith.constant dense<0.000000e+00> : vector<34x32xf32>
    %15 = tpu.matmul %12, %14, %cst_7 {dimension_numbers = #tpu.dot_dimension_numbers<[1], [0], [0], [1], [0, 0, 1, 1], [], []>} : vector<34x16xf32>, vector<16x32xf32>, vector<34x32xf32> -> vector<34x32xf32>
    %16 = arith.addf %11, %15 : vector<34x32xf32>
    %17 = vector.extract_strided_slice %2 {offsets = [0, 0], sizes = [1, 32], strides = [1, 1]} : vector<3x32xf32> to vector<1x32xf32>
    %18 = vector.broadcast %17 : vector<1x32xf32> to vector<34x32xf32>
    %19 = arith.addf %16, %18 : vector<34x32xf32>
    %cst_8 = arith.constant 0.000000e+00 : f32
    %20 = vector.broadcast %cst_8 : f32 to vector<34x32xf32>
    %21 = arith.maximumf %19, %20 : vector<34x32xf32>
    %22 = vector.extract_strided_slice %2 {offsets = [1, 0], sizes = [1, 32], strides = [1, 1]} : vector<3x32xf32> to vector<1x32xf32>
    %23 = vector.broadcast %22 : vector<1x32xf32> to vector<34x32xf32>
    %24 = arith.mulf %21, %23 : vector<34x32xf32>
    %25 = vector.extract_strided_slice %2 {offsets = [2, 0], sizes = [1, 32], strides = [1, 1]} : vector<3x32xf32> to vector<1x32xf32>
    %26 = vector.broadcast %25 : vector<1x32xf32> to vector<34x32xf32>
    %27 = arith.addf %24, %26 : vector<34x32xf32>
    %c0_9 = arith.constant 0 : index
    %c0_10 = arith.constant 0 : index
    %c0_11 = arith.constant 0 : index
    %28 = vector.load %arg4[%c0_9, %c0_10, %c0_11] : memref<3x32x32xf32, #tpu.memory_space<vmem>>, vector<3x32x32xf32>
    %c0_12 = arith.constant 0 : index
    %c0_13 = arith.constant 0 : index
    %29 = vector.load %arg5[%c0_12, %c0_13] : memref<3x32xf32, #tpu.memory_space<vmem>>, vector<3x32xf32>
    %30 = vector.extract_strided_slice %27 {offsets = [0, 0], sizes = [32, 32], strides = [1, 1]} : vector<34x32xf32> to vector<32x32xf32>
    %31 = vector.extract_strided_slice %28 {offsets = [0, 0, 0], sizes = [1, 32, 32], strides = [1, 1, 1]} : vector<3x32x32xf32> to vector<1x32x32xf32>
    %32 = vector.shape_cast %31 : vector<1x32x32xf32> to vector<32x32xf32>
    %cst_14 = arith.constant dense<0.000000e+00> : vector<32x32xf32>
    %33 = tpu.matmul %30, %32, %cst_14 {dimension_numbers = #tpu.dot_dimension_numbers<[1], [0], [0], [1], [0, 0, 1, 1], [], []>} : vector<32x32xf32>, vector<32x32xf32>, vector<32x32xf32> -> vector<32x32xf32>
    %34 = vector.extract_strided_slice %27 {offsets = [1, 0], sizes = [32, 32], strides = [1, 1]} : vector<34x32xf32> to vector<32x32xf32>
    %35 = vector.extract_strided_slice %28 {offsets = [1, 0, 0], sizes = [1, 32, 32], strides = [1, 1, 1]} : vector<3x32x32xf32> to vector<1x32x32xf32>
    %36 = vector.shape_cast %35 : vector<1x32x32xf32> to vector<32x32xf32>
    %cst_15 = arith.constant dense<0.000000e+00> : vector<32x32xf32>
    %37 = tpu.matmul %34, %36, %cst_15 {dimension_numbers = #tpu.dot_dimension_numbers<[1], [0], [0], [1], [0, 0, 1, 1], [], []>} : vector<32x32xf32>, vector<32x32xf32>, vector<32x32xf32> -> vector<32x32xf32>
    %38 = arith.addf %33, %37 : vector<32x32xf32>
    %39 = vector.extract_strided_slice %27 {offsets = [2, 0], sizes = [32, 32], strides = [1, 1]} : vector<34x32xf32> to vector<32x32xf32>
    %40 = vector.extract_strided_slice %28 {offsets = [2, 0, 0], sizes = [1, 32, 32], strides = [1, 1, 1]} : vector<3x32x32xf32> to vector<1x32x32xf32>
    %41 = vector.shape_cast %40 : vector<1x32x32xf32> to vector<32x32xf32>
    %cst_16 = arith.constant dense<0.000000e+00> : vector<32x32xf32>
    %42 = tpu.matmul %39, %41, %cst_16 {dimension_numbers = #tpu.dot_dimension_numbers<[1], [0], [0], [1], [0, 0, 1, 1], [], []>} : vector<32x32xf32>, vector<32x32xf32>, vector<32x32xf32> -> vector<32x32xf32>
    %43 = arith.addf %38, %42 : vector<32x32xf32>
    %44 = vector.extract_strided_slice %29 {offsets = [0, 0], sizes = [1, 32], strides = [1, 1]} : vector<3x32xf32> to vector<1x32xf32>
    %45 = vector.broadcast %44 : vector<1x32xf32> to vector<32x32xf32>
    %46 = arith.addf %43, %45 : vector<32x32xf32>
    %cst_17 = arith.constant 0.000000e+00 : f32
    %47 = vector.broadcast %cst_17 : f32 to vector<32x32xf32>
    %48 = arith.maximumf %46, %47 : vector<32x32xf32>
    %49 = vector.extract_strided_slice %29 {offsets = [1, 0], sizes = [1, 32], strides = [1, 1]} : vector<3x32xf32> to vector<1x32xf32>
    %50 = vector.broadcast %49 : vector<1x32xf32> to vector<32x32xf32>
    %51 = arith.mulf %48, %50 : vector<32x32xf32>
    %52 = vector.extract_strided_slice %29 {offsets = [2, 0], sizes = [1, 32], strides = [1, 1]} : vector<3x32xf32> to vector<1x32xf32>
    %53 = vector.broadcast %52 : vector<1x32xf32> to vector<32x32xf32>
    %54 = arith.addf %51, %53 : vector<32x32xf32>
    %55 = vector.extract_strided_slice %54 {offsets = [0, 0], sizes = [1, 32], strides = [1, 1]} : vector<32x32xf32> to vector<1x32xf32>
    %56 = vector.extract_strided_slice %54 {offsets = [1, 0], sizes = [1, 32], strides = [1, 1]} : vector<32x32xf32> to vector<1x32xf32>
    %57 = arith.maximumf %55, %56 : vector<1x32xf32>
    %58 = vector.extract_strided_slice %54 {offsets = [16, 0], sizes = [1, 32], strides = [1, 1]} : vector<32x32xf32> to vector<1x32xf32>
    %59 = vector.extract_strided_slice %54 {offsets = [17, 0], sizes = [1, 32], strides = [1, 1]} : vector<32x32xf32> to vector<1x32xf32>
    %60 = arith.maximumf %58, %59 : vector<1x32xf32>
    %61 = vector.extract_strided_slice %54 {offsets = [2, 0], sizes = [1, 32], strides = [1, 1]} : vector<32x32xf32> to vector<1x32xf32>
    %62 = vector.extract_strided_slice %54 {offsets = [3, 0], sizes = [1, 32], strides = [1, 1]} : vector<32x32xf32> to vector<1x32xf32>
    %63 = arith.maximumf %61, %62 : vector<1x32xf32>
    %64 = vector.extract_strided_slice %54 {offsets = [18, 0], sizes = [1, 32], strides = [1, 1]} : vector<32x32xf32> to vector<1x32xf32>
    %65 = vector.extract_strided_slice %54 {offsets = [19, 0], sizes = [1, 32], strides = [1, 1]} : vector<32x32xf32> to vector<1x32xf32>
    %66 = arith.maximumf %64, %65 : vector<1x32xf32>
    %67 = vector.extract_strided_slice %54 {offsets = [4, 0], sizes = [1, 32], strides = [1, 1]} : vector<32x32xf32> to vector<1x32xf32>
    %68 = vector.extract_strided_slice %54 {offsets = [5, 0], sizes = [1, 32], strides = [1, 1]} : vector<32x32xf32> to vector<1x32xf32>
    %69 = arith.maximumf %67, %68 : vector<1x32xf32>
    %70 = vector.extract_strided_slice %54 {offsets = [20, 0], sizes = [1, 32], strides = [1, 1]} : vector<32x32xf32> to vector<1x32xf32>
    %71 = vector.extract_strided_slice %54 {offsets = [21, 0], sizes = [1, 32], strides = [1, 1]} : vector<32x32xf32> to vector<1x32xf32>
    %72 = arith.maximumf %70, %71 : vector<1x32xf32>
    %73 = vector.extract_strided_slice %54 {offsets = [6, 0], sizes = [1, 32], strides = [1, 1]} : vector<32x32xf32> to vector<1x32xf32>
    %74 = vector.extract_strided_slice %54 {offsets = [7, 0], sizes = [1, 32], strides = [1, 1]} : vector<32x32xf32> to vector<1x32xf32>
    %75 = arith.maximumf %73, %74 : vector<1x32xf32>
    %76 = vector.extract_strided_slice %54 {offsets = [22, 0], sizes = [1, 32], strides = [1, 1]} : vector<32x32xf32> to vector<1x32xf32>
    %77 = vector.extract_strided_slice %54 {offsets = [23, 0], sizes = [1, 32], strides = [1, 1]} : vector<32x32xf32> to vector<1x32xf32>
    %78 = arith.maximumf %76, %77 : vector<1x32xf32>
    %79 = vector.extract_strided_slice %54 {offsets = [8, 0], sizes = [1, 32], strides = [1, 1]} : vector<32x32xf32> to vector<1x32xf32>
    %80 = vector.extract_strided_slice %54 {offsets = [9, 0], sizes = [1, 32], strides = [1, 1]} : vector<32x32xf32> to vector<1x32xf32>
    %81 = arith.maximumf %79, %80 : vector<1x32xf32>
    %82 = vector.extract_strided_slice %54 {offsets = [24, 0], sizes = [1, 32], strides = [1, 1]} : vector<32x32xf32> to vector<1x32xf32>
    %83 = vector.extract_strided_slice %54 {offsets = [25, 0], sizes = [1, 32], strides = [1, 1]} : vector<32x32xf32> to vector<1x32xf32>
    %84 = arith.maximumf %82, %83 : vector<1x32xf32>
    %85 = vector.extract_strided_slice %54 {offsets = [10, 0], sizes = [1, 32], strides = [1, 1]} : vector<32x32xf32> to vector<1x32xf32>
    %86 = vector.extract_strided_slice %54 {offsets = [11, 0], sizes = [1, 32], strides = [1, 1]} : vector<32x32xf32> to vector<1x32xf32>
    %87 = arith.maximumf %85, %86 : vector<1x32xf32>
    %88 = vector.extract_strided_slice %54 {offsets = [26, 0], sizes = [1, 32], strides = [1, 1]} : vector<32x32xf32> to vector<1x32xf32>
    %89 = vector.extract_strided_slice %54 {offsets = [27, 0], sizes = [1, 32], strides = [1, 1]} : vector<32x32xf32> to vector<1x32xf32>
    %90 = arith.maximumf %88, %89 : vector<1x32xf32>
    %91 = tpu.concatenate %57, %60, %63, %66, %69, %72, %75, %78, %81, %84, %87, %90 in 0 : vector<1x32xf32>, vector<1x32xf32>, vector<1x32xf32>, vector<1x32xf32>, vector<1x32xf32>, vector<1x32xf32>, vector<1x32xf32>, vector<1x32xf32>, vector<1x32xf32>, vector<1x32xf32>, vector<1x32xf32>, vector<1x32xf32> -> vector<12x32xf32>
    %c0_18 = arith.constant 0 : index
    %c0_19 = arith.constant 0 : index
    %92 = vector.load %arg6[%c0_18, %c0_19] : memref<32x128xf32, #tpu.memory_space<vmem>>, vector<32x128xf32>
    %cst_20 = arith.constant dense<0.000000e+00> : vector<12x128xf32>
    %93 = tpu.matmul %91, %92, %cst_20 {dimension_numbers = #tpu.dot_dimension_numbers<[1], [0], [0], [1], [0, 0, 1, 1], [], []>} : vector<12x32xf32>, vector<32x128xf32>, vector<12x128xf32> -> vector<12x128xf32>
    %c0_21 = arith.constant 0 : index
    %c0_22 = arith.constant 0 : index
    %94 = vector.load %arg8[%c0_21, %c0_22] : memref<1x128xf32, #tpu.memory_space<vmem>>, vector<1x128xf32>
    %95 = vector.broadcast %94 : vector<1x128xf32> to vector<12x128xf32>
    %96 = arith.addf %93, %95 : vector<12x128xf32>
    %c0_23 = arith.constant 0 : index
    %c0_24 = arith.constant 0 : index
    %97 = vector.load %arg7[%c0_23, %c0_24] : memref<32x128xf32, #tpu.memory_space<vmem>>, vector<32x128xf32>
    %c0_25 = arith.constant 0 : index
    %c0_26 = arith.constant 0 : index
    %98 = vector.load %arg1[%c0_25, %c0_26] : memref<2x1xi32, #tpu.memory_space<vmem>>, vector<2x1xi32>
    %c0_27 = arith.constant 0 : index
    %c0_28 = arith.constant 0 : index
    %99 = vector.load %arg9[%c0_27, %c0_28] : memref<2x32xf32, #tpu.memory_space<vmem>>, vector<2x32xf32>
    %c0_29 = arith.constant 0 : index
    %c0_30 = arith.constant 0 : index
    %100 = vector.load %arg10[%c0_29, %c0_30] : memref<2x32xf32, #tpu.memory_space<vmem>>, vector<2x32xf32>
    %101 = vector.extract_strided_slice %96 {offsets = [0, 0], sizes = [2, 128], strides = [1, 1]} : vector<12x128xf32> to vector<2x128xf32>
    %cst_31 = arith.constant dense<0.000000e+00> : vector<2x128xf32>
    %102 = tpu.matmul %99, %97, %cst_31 {dimension_numbers = #tpu.dot_dimension_numbers<[1], [0], [0], [1], [0, 0, 1, 1], [], []>} : vector<2x32xf32>, vector<32x128xf32>, vector<2x128xf32> -> vector<2x128xf32>
    %103 = arith.addf %101, %102 : vector<2x128xf32>
    %104 = arith.negf %103 : vector<2x128xf32>
    %105 = math.exp %104 : vector<2x128xf32>
    %cst_32 = arith.constant 1.000000e+00 : f32
    %106 = vector.broadcast %cst_32 : f32 to vector<2x128xf32>
    %107 = arith.addf %106, %105 : vector<2x128xf32>
    %108 = arith.divf %106, %107 : vector<2x128xf32>
    %109 = math.tanh %103 : vector<2x128xf32>
    %110 = vector.extract_strided_slice %108 {offsets = [0, 0], sizes = [2, 32], strides = [1, 1]} : vector<2x128xf32> to vector<2x32xf32>
    %111 = vector.extract_strided_slice %108 {offsets = [0, 32], sizes = [2, 32], strides = [1, 1]} : vector<2x128xf32> to vector<2x32xf32>
    %112 = vector.extract_strided_slice %109 {offsets = [0, 64], sizes = [2, 32], strides = [1, 1]} : vector<2x128xf32> to vector<2x32xf32>
    %113 = vector.extract_strided_slice %108 {offsets = [0, 96], sizes = [2, 32], strides = [1, 1]} : vector<2x128xf32> to vector<2x32xf32>
    %114 = arith.mulf %111, %100 : vector<2x32xf32>
    %115 = arith.mulf %110, %112 : vector<2x32xf32>
    %116 = arith.addf %114, %115 : vector<2x32xf32>
    %117 = math.tanh %116 : vector<2x32xf32>
    %118 = arith.mulf %113, %117 : vector<2x32xf32>
    %c0_i32 = arith.constant 0 : i32
    %119 = vector.broadcast %c0_i32 : i32 to vector<2x1xi32>
    %120 = arith.cmpi sgt, %98, %119 : vector<2x1xi32>
    %121 = vector.shape_cast %120 : vector<2x1xi1> to vector<2x1xi1>
    %122 = vector.broadcast %121 : vector<2x1xi1> to vector<2x32xi1>
    %123 = arith.select %122, %118, %99 : vector<2x32xi1>, vector<2x32xf32>
    %124 = vector.shape_cast %120 : vector<2x1xi1> to vector<2x1xi1>
    %125 = vector.broadcast %124 : vector<2x1xi1> to vector<2x32xi1>
    %126 = arith.select %125, %116, %100 : vector<2x32xi1>, vector<2x32xf32>
    %127 = vector.extract_strided_slice %96 {offsets = [2, 0], sizes = [2, 128], strides = [1, 1]} : vector<12x128xf32> to vector<2x128xf32>
    %cst_33 = arith.constant dense<0.000000e+00> : vector<2x128xf32>
    %128 = tpu.matmul %123, %97, %cst_33 {dimension_numbers = #tpu.dot_dimension_numbers<[1], [0], [0], [1], [0, 0, 1, 1], [], []>} : vector<2x32xf32>, vector<32x128xf32>, vector<2x128xf32> -> vector<2x128xf32>
    %129 = arith.addf %127, %128 : vector<2x128xf32>
    %130 = arith.negf %129 : vector<2x128xf32>
    %131 = math.exp %130 : vector<2x128xf32>
    %cst_34 = arith.constant 1.000000e+00 : f32
    %132 = vector.broadcast %cst_34 : f32 to vector<2x128xf32>
    %133 = arith.addf %132, %131 : vector<2x128xf32>
    %134 = arith.divf %132, %133 : vector<2x128xf32>
    %135 = math.tanh %129 : vector<2x128xf32>
    %136 = vector.extract_strided_slice %134 {offsets = [0, 0], sizes = [2, 32], strides = [1, 1]} : vector<2x128xf32> to vector<2x32xf32>
    %137 = vector.extract_strided_slice %134 {offsets = [0, 32], sizes = [2, 32], strides = [1, 1]} : vector<2x128xf32> to vector<2x32xf32>
    %138 = vector.extract_strided_slice %135 {offsets = [0, 64], sizes = [2, 32], strides = [1, 1]} : vector<2x128xf32> to vector<2x32xf32>
    %139 = vector.extract_strided_slice %134 {offsets = [0, 96], sizes = [2, 32], strides = [1, 1]} : vector<2x128xf32> to vector<2x32xf32>
    %140 = arith.mulf %137, %126 : vector<2x32xf32>
    %141 = arith.mulf %136, %138 : vector<2x32xf32>
    %142 = arith.addf %140, %141 : vector<2x32xf32>
    %143 = math.tanh %142 : vector<2x32xf32>
    %144 = arith.mulf %139, %143 : vector<2x32xf32>
    %c1_i32 = arith.constant 1 : i32
    %145 = vector.broadcast %c1_i32 : i32 to vector<2x1xi32>
    %146 = arith.cmpi sgt, %98, %145 : vector<2x1xi32>
    %147 = vector.shape_cast %146 : vector<2x1xi1> to vector<2x1xi1>
    %148 = vector.broadcast %147 : vector<2x1xi1> to vector<2x32xi1>
    %149 = arith.select %148, %144, %123 : vector<2x32xi1>, vector<2x32xf32>
    %150 = vector.shape_cast %146 : vector<2x1xi1> to vector<2x1xi1>
    %151 = vector.broadcast %150 : vector<2x1xi1> to vector<2x32xi1>
    %152 = arith.select %151, %142, %126 : vector<2x32xi1>, vector<2x32xf32>
    %153 = vector.extract_strided_slice %96 {offsets = [4, 0], sizes = [2, 128], strides = [1, 1]} : vector<12x128xf32> to vector<2x128xf32>
    %cst_35 = arith.constant dense<0.000000e+00> : vector<2x128xf32>
    %154 = tpu.matmul %149, %97, %cst_35 {dimension_numbers = #tpu.dot_dimension_numbers<[1], [0], [0], [1], [0, 0, 1, 1], [], []>} : vector<2x32xf32>, vector<32x128xf32>, vector<2x128xf32> -> vector<2x128xf32>
    %155 = arith.addf %153, %154 : vector<2x128xf32>
    %156 = arith.negf %155 : vector<2x128xf32>
    %157 = math.exp %156 : vector<2x128xf32>
    %cst_36 = arith.constant 1.000000e+00 : f32
    %158 = vector.broadcast %cst_36 : f32 to vector<2x128xf32>
    %159 = arith.addf %158, %157 : vector<2x128xf32>
    %160 = arith.divf %158, %159 : vector<2x128xf32>
    %161 = math.tanh %155 : vector<2x128xf32>
    %162 = vector.extract_strided_slice %160 {offsets = [0, 0], sizes = [2, 32], strides = [1, 1]} : vector<2x128xf32> to vector<2x32xf32>
    %163 = vector.extract_strided_slice %160 {offsets = [0, 32], sizes = [2, 32], strides = [1, 1]} : vector<2x128xf32> to vector<2x32xf32>
    %164 = vector.extract_strided_slice %161 {offsets = [0, 64], sizes = [2, 32], strides = [1, 1]} : vector<2x128xf32> to vector<2x32xf32>
    %165 = vector.extract_strided_slice %160 {offsets = [0, 96], sizes = [2, 32], strides = [1, 1]} : vector<2x128xf32> to vector<2x32xf32>
    %166 = arith.mulf %163, %152 : vector<2x32xf32>
    %167 = arith.mulf %162, %164 : vector<2x32xf32>
    %168 = arith.addf %166, %167 : vector<2x32xf32>
    %169 = math.tanh %168 : vector<2x32xf32>
    %170 = arith.mulf %165, %169 : vector<2x32xf32>
    %c2_i32 = arith.constant 2 : i32
    %171 = vector.broadcast %c2_i32 : i32 to vector<2x1xi32>
    %172 = arith.cmpi sgt, %98, %171 : vector<2x1xi32>
    %173 = vector.shape_cast %172 : vector<2x1xi1> to vector<2x1xi1>
    %174 = vector.broadcast %173 : vector<2x1xi1> to vector<2x32xi1>
    %175 = arith.select %174, %170, %149 : vector<2x32xi1>, vector<2x32xf32>
    %176 = vector.shape_cast %172 : vector<2x1xi1> to vector<2x1xi1>
    %177 = vector.broadcast %176 : vector<2x1xi1> to vector<2x32xi1>
    %178 = arith.select %177, %168, %152 : vector<2x32xi1>, vector<2x32xf32>
    %179 = vector.extract_strided_slice %96 {offsets = [6, 0], sizes = [2, 128], strides = [1, 1]} : vector<12x128xf32> to vector<2x128xf32>
    %cst_37 = arith.constant dense<0.000000e+00> : vector<2x128xf32>
    %180 = tpu.matmul %175, %97, %cst_37 {dimension_numbers = #tpu.dot_dimension_numbers<[1], [0], [0], [1], [0, 0, 1, 1], [], []>} : vector<2x32xf32>, vector<32x128xf32>, vector<2x128xf32> -> vector<2x128xf32>
    %181 = arith.addf %179, %180 : vector<2x128xf32>
    %182 = arith.negf %181 : vector<2x128xf32>
    %183 = math.exp %182 : vector<2x128xf32>
    %cst_38 = arith.constant 1.000000e+00 : f32
    %184 = vector.broadcast %cst_38 : f32 to vector<2x128xf32>
    %185 = arith.addf %184, %183 : vector<2x128xf32>
    %186 = arith.divf %184, %185 : vector<2x128xf32>
    %187 = math.tanh %181 : vector<2x128xf32>
    %188 = vector.extract_strided_slice %186 {offsets = [0, 0], sizes = [2, 32], strides = [1, 1]} : vector<2x128xf32> to vector<2x32xf32>
    %189 = vector.extract_strided_slice %186 {offsets = [0, 32], sizes = [2, 32], strides = [1, 1]} : vector<2x128xf32> to vector<2x32xf32>
    %190 = vector.extract_strided_slice %187 {offsets = [0, 64], sizes = [2, 32], strides = [1, 1]} : vector<2x128xf32> to vector<2x32xf32>
    %191 = vector.extract_strided_slice %186 {offsets = [0, 96], sizes = [2, 32], strides = [1, 1]} : vector<2x128xf32> to vector<2x32xf32>
    %192 = arith.mulf %189, %178 : vector<2x32xf32>
    %193 = arith.mulf %188, %190 : vector<2x32xf32>
    %194 = arith.addf %192, %193 : vector<2x32xf32>
    %195 = math.tanh %194 : vector<2x32xf32>
    %196 = arith.mulf %191, %195 : vector<2x32xf32>
    %c3_i32 = arith.constant 3 : i32
    %197 = vector.broadcast %c3_i32 : i32 to vector<2x1xi32>
    %198 = arith.cmpi sgt, %98, %197 : vector<2x1xi32>
    %199 = vector.shape_cast %198 : vector<2x1xi1> to vector<2x1xi1>
    %200 = vector.broadcast %199 : vector<2x1xi1> to vector<2x32xi1>
    %201 = arith.select %200, %196, %175 : vector<2x32xi1>, vector<2x32xf32>
    %202 = vector.shape_cast %198 : vector<2x1xi1> to vector<2x1xi1>
    %203 = vector.broadcast %202 : vector<2x1xi1> to vector<2x32xi1>
    %204 = arith.select %203, %194, %178 : vector<2x32xi1>, vector<2x32xf32>
    %205 = vector.extract_strided_slice %96 {offsets = [8, 0], sizes = [2, 128], strides = [1, 1]} : vector<12x128xf32> to vector<2x128xf32>
    %cst_39 = arith.constant dense<0.000000e+00> : vector<2x128xf32>
    %206 = tpu.matmul %201, %97, %cst_39 {dimension_numbers = #tpu.dot_dimension_numbers<[1], [0], [0], [1], [0, 0, 1, 1], [], []>} : vector<2x32xf32>, vector<32x128xf32>, vector<2x128xf32> -> vector<2x128xf32>
    %207 = arith.addf %205, %206 : vector<2x128xf32>
    %208 = arith.negf %207 : vector<2x128xf32>
    %209 = math.exp %208 : vector<2x128xf32>
    %cst_40 = arith.constant 1.000000e+00 : f32
    %210 = vector.broadcast %cst_40 : f32 to vector<2x128xf32>
    %211 = arith.addf %210, %209 : vector<2x128xf32>
    %212 = arith.divf %210, %211 : vector<2x128xf32>
    %213 = math.tanh %207 : vector<2x128xf32>
    %214 = vector.extract_strided_slice %212 {offsets = [0, 0], sizes = [2, 32], strides = [1, 1]} : vector<2x128xf32> to vector<2x32xf32>
    %215 = vector.extract_strided_slice %212 {offsets = [0, 32], sizes = [2, 32], strides = [1, 1]} : vector<2x128xf32> to vector<2x32xf32>
    %216 = vector.extract_strided_slice %213 {offsets = [0, 64], sizes = [2, 32], strides = [1, 1]} : vector<2x128xf32> to vector<2x32xf32>
    %217 = vector.extract_strided_slice %212 {offsets = [0, 96], sizes = [2, 32], strides = [1, 1]} : vector<2x128xf32> to vector<2x32xf32>
    %218 = arith.mulf %215, %204 : vector<2x32xf32>
    %219 = arith.mulf %214, %216 : vector<2x32xf32>
    %220 = arith.addf %218, %219 : vector<2x32xf32>
    %221 = math.tanh %220 : vector<2x32xf32>
    %222 = arith.mulf %217, %221 : vector<2x32xf32>
    %c4_i32 = arith.constant 4 : i32
    %223 = vector.broadcast %c4_i32 : i32 to vector<2x1xi32>
    %224 = arith.cmpi sgt, %98, %223 : vector<2x1xi32>
    %225 = vector.shape_cast %224 : vector<2x1xi1> to vector<2x1xi1>
    %226 = vector.broadcast %225 : vector<2x1xi1> to vector<2x32xi1>
    %227 = arith.select %226, %222, %201 : vector<2x32xi1>, vector<2x32xf32>
    %228 = vector.shape_cast %224 : vector<2x1xi1> to vector<2x1xi1>
    %229 = vector.broadcast %228 : vector<2x1xi1> to vector<2x32xi1>
    %230 = arith.select %229, %220, %204 : vector<2x32xi1>, vector<2x32xf32>
    %231 = vector.extract_strided_slice %96 {offsets = [10, 0], sizes = [2, 128], strides = [1, 1]} : vector<12x128xf32> to vector<2x128xf32>
    %cst_41 = arith.constant dense<0.000000e+00> : vector<2x128xf32>
    %232 = tpu.matmul %227, %97, %cst_41 {dimension_numbers = #tpu.dot_dimension_numbers<[1], [0], [0], [1], [0, 0, 1, 1], [], []>} : vector<2x32xf32>, vector<32x128xf32>, vector<2x128xf32> -> vector<2x128xf32>
    %233 = arith.addf %231, %232 : vector<2x128xf32>
    %234 = arith.negf %233 : vector<2x128xf32>
    %235 = math.exp %234 : vector<2x128xf32>
    %cst_42 = arith.constant 1.000000e+00 : f32
    %236 = vector.broadcast %cst_42 : f32 to vector<2x128xf32>
    %237 = arith.addf %236, %235 : vector<2x128xf32>
    %238 = arith.divf %236, %237 : vector<2x128xf32>
    %239 = math.tanh %233 : vector<2x128xf32>
    %240 = vector.extract_strided_slice %238 {offsets = [0, 0], sizes = [2, 32], strides = [1, 1]} : vector<2x128xf32> to vector<2x32xf32>
    %241 = vector.extract_strided_slice %238 {offsets = [0, 32], sizes = [2, 32], strides = [1, 1]} : vector<2x128xf32> to vector<2x32xf32>
    %242 = vector.extract_strided_slice %239 {offsets = [0, 64], sizes = [2, 32], strides = [1, 1]} : vector<2x128xf32> to vector<2x32xf32>
    %243 = vector.extract_strided_slice %238 {offsets = [0, 96], sizes = [2, 32], strides = [1, 1]} : vector<2x128xf32> to vector<2x32xf32>
    %244 = arith.mulf %241, %230 : vector<2x32xf32>
    %245 = arith.mulf %240, %242 : vector<2x32xf32>
    %246 = arith.addf %244, %245 : vector<2x32xf32>
    %247 = math.tanh %246 : vector<2x32xf32>
    %248 = arith.mulf %243, %247 : vector<2x32xf32>
    %c5_i32 = arith.constant 5 : i32
    %249 = vector.broadcast %c5_i32 : i32 to vector<2x1xi32>
    %250 = arith.cmpi sgt, %98, %249 : vector<2x1xi32>
    %251 = vector.shape_cast %250 : vector<2x1xi1> to vector<2x1xi1>
    %252 = vector.broadcast %251 : vector<2x1xi1> to vector<2x32xi1>
    %253 = arith.select %252, %248, %227 : vector<2x32xi1>, vector<2x32xf32>
    %c0_43 = arith.constant 0 : index
    %c0_44 = arith.constant 0 : index
    %254 = vector.load %arg11[%c0_43, %c0_44] : memref<2x32xf32, #tpu.memory_space<vmem>>, vector<2x32xf32>
    %cst_45 = arith.constant dense<0.000000e+00> : vector<2xf32>
    %255 = vector.multi_reduction <add>, %253, %cst_45 [1] : vector<2x32xf32> to vector<2xf32>
    %256 = vector.shape_cast %255 : vector<2xf32> to vector<2x1xf32>
    %cst_46 = arith.constant 3.200000e+01 : f32
    %257 = vector.broadcast %cst_46 : f32 to vector<2x1xf32>
    %258 = arith.divf %256, %257 : vector<2x1xf32>
    %259 = vector.broadcast %258 : vector<2x1xf32> to vector<2x32xf32>
    %260 = arith.subf %253, %259 : vector<2x32xf32>
    %261 = arith.mulf %260, %260 : vector<2x32xf32>
    %cst_47 = arith.constant dense<0.000000e+00> : vector<2xf32>
    %262 = vector.multi_reduction <add>, %261, %cst_47 [1] : vector<2x32xf32> to vector<2xf32>
    %263 = vector.shape_cast %262 : vector<2xf32> to vector<2x1xf32>
    %cst_48 = arith.constant 3.200000e+01 : f32
    %264 = vector.broadcast %cst_48 : f32 to vector<2x1xf32>
    %265 = arith.divf %263, %264 : vector<2x1xf32>
    %266 = vector.broadcast %258 : vector<2x1xf32> to vector<2x32xf32>
    %267 = arith.subf %253, %266 : vector<2x32xf32>
    %cst_49 = arith.constant 9.99999974E-6 : f32
    %268 = vector.broadcast %cst_49 : f32 to vector<2x1xf32>
    %269 = arith.addf %265, %268 : vector<2x1xf32>
    %270 = math.rsqrt %269 : vector<2x1xf32>
    %271 = vector.broadcast %270 : vector<2x1xf32> to vector<2x32xf32>
    %272 = arith.mulf %267, %271 : vector<2x32xf32>
    %273 = vector.extract_strided_slice %254 {offsets = [0, 0], sizes = [1, 32], strides = [1, 1]} : vector<2x32xf32> to vector<1x32xf32>
    %274 = vector.broadcast %273 : vector<1x32xf32> to vector<2x32xf32>
    %275 = arith.mulf %272, %274 : vector<2x32xf32>
    %276 = vector.extract_strided_slice %254 {offsets = [1, 0], sizes = [1, 32], strides = [1, 1]} : vector<2x32xf32> to vector<1x32xf32>
    %277 = vector.broadcast %276 : vector<1x32xf32> to vector<2x32xf32>
    %278 = arith.addf %275, %277 : vector<2x32xf32>
    %c0_50 = arith.constant 0 : index
    %c0_51 = arith.constant 0 : index
    %279 = vector.load %arg12[%c0_50, %c0_51] : memref<32x128xf32, #tpu.memory_space<vmem>>, vector<32x128xf32>
    %cst_52 = arith.constant dense<0.000000e+00> : vector<2x128xf32>
    %280 = tpu.matmul %278, %279, %cst_52 {dimension_numbers = #tpu.dot_dimension_numbers<[1], [0], [0], [1], [0, 0, 1, 1], [], []>} : vector<2x32xf32>, vector<32x128xf32>, vector<2x128xf32> -> vector<2x128xf32>
    %c0_53 = arith.constant 0 : index
    %c0_54 = arith.constant 0 : index
    %281 = vector.load %arg13[%c0_53, %c0_54] : memref<1x128xf32, #tpu.memory_space<vmem>>, vector<1x128xf32>
    %282 = vector.broadcast %281 : vector<1x128xf32> to vector<2x128xf32>
    %283 = arith.addf %280, %282 : vector<2x128xf32>
    %c0_55 = arith.constant 0 : index
    %c0_56 = arith.constant 0 : index
    %284 = vector.load %arg14[%c0_55, %c0_56] : memref<2x128xf32, #tpu.memory_space<vmem>>, vector<2x128xf32>
    tpu.vector_store %arg14[%c0_55, %c0_56], %283 {strides = array<i32>} : memref<2x128xf32, #tpu.memory_space<vmem>>, vector<2x128xf32>,
    return
  }
}

</mosaic_0001>

<llo_original>
// kernel: _lambda_.1
$region0: #{_lambda_.1}
  #allocation0 [shape = 'u32[]', space=smem, size = 0x4, offset = 0x4, fixed_abs, tag = 'smem constant byte address 0x4 - core index']
  #allocation1 [shape = 'u32[144,128]{1,0:T(1,128)}', space=vmem, size = 0x12000, scoped, tag = 'internal scratch']
  %s0 = inlined_call_operand.vmem [shape: f32[36,16], index: 0, kind: input, shape index: {}]
  %s1 = inlined_call_operand.vmem [shape: s32[2,1], index: 1, kind: input, shape index: {}]
  %s2 = inlined_call_operand.vmem [shape: f32[3,16,32], index: 2, kind: input, shape index: {}]
  %s3 = inlined_call_operand.vmem [shape: f32[3,32], index: 3, kind: input, shape index: {}]
  %s4 = inlined_call_operand.vmem [shape: f32[3,32,32], index: 4, kind: input, shape index: {}]
  %s5 = inlined_call_operand.vmem [shape: f32[3,32], index: 5, kind: input, shape index: {}]
  %s6 = inlined_call_operand.vmem [shape: f32[32,128], index: 6, kind: input, shape index: {}]
  %s7 = inlined_call_operand.vmem [shape: f32[32,128], index: 7, kind: input, shape index: {}]
  %s8 = inlined_call_operand.vmem [shape: f32[1,128], index: 8, kind: input, shape index: {}]
  %s9 = inlined_call_operand.vmem [shape: f32[2,32], index: 9, kind: input, shape index: {}]
  %s10 = inlined_call_operand.vmem [shape: f32[2,32], index: 10, kind: input, shape index: {}]
  %s11 = inlined_call_operand.vmem [shape: f32[2,32], index: 11, kind: input, shape index: {}]
  %s12 = inlined_call_operand.vmem [shape: f32[32,128], index: 12, kind: input, shape index: {}]
  %s13 = inlined_call_operand.vmem [shape: f32[1,128], index: 13, kind: input, shape index: {}]
  %s14 = inlined_call_operand.hbm [shape: f32[2,128], index: 14, kind: output, shape index: {}]
  %s15 = sld [smem:[#allocation0]]
  $region66: #{_lambda_.1} parent=0
    _
  %s17 = ssub.s32 1, %s15
  %s18 = scalar_select 0, %s17, %s15
  $region1: #{_lambda_.1} parent=0
    #allocation2 [shape = 'u8[1024]{0}', space=vmem, size = 0x400, scoped, tag = 'output window, operand 0, single buffered']
    #allocation3 [shape = 's32[1]{0}', space=sflag, size = 0x4, scoped, tag = 'scoped memory for _lambda_.1']
    %19 = vsyncpa [#allocation3], 0
    // Predicated region
    $region2: #{_lambda_.1} parent=1 // pred_check
      _
    $region3: #{_lambda_.1} parent=1 // pred_check_branch
      %21 = sbr.rel (0) target = $region5
    $region4: #{_lambda_.1} parent=1 // pred_region
      _
    $region5: #{_lambda_.1} parent=1 // pred_fallthru
      _
    // Predicated region
    $region6: #{_lambda_.1} parent=1 // pred_check
      _
    $region7: #{_lambda_.1} parent=1 // pred_check_branch
      %23 = sbr.rel (0) target = $region9
    $region8: #{_lambda_.1} parent=1 // pred_region
      _
    $region9: #{_lambda_.1} parent=1 // pred_fallthru
      _
    // Predicated region
    $region10: #{_lambda_.1} parent=1 // pred_check
      _
    $region11: #{_lambda_.1} parent=1 // pred_check_branch
      %25 = sbr.rel (0) target = $region13
    $region12: #{_lambda_.1} parent=1 // pred_region
      _
    $region13: #{_lambda_.1} parent=1 // pred_fallthru
      _
    // Predicated region
    $region14: #{_lambda_.1} parent=1 // pred_check
      _
    $region15: #{_lambda_.1} parent=1 // pred_check_branch
      %27 = sbr.rel (0) target = $region17
    $region16: #{_lambda_.1} parent=1 // pred_region
      _
    $region17: #{_lambda_.1} parent=1 // pred_fallthru
      _
    // Predicated region
    $region18: #{_lambda_.1} parent=1 // pred_check
      _
    $region19: #{_lambda_.1} parent=1 // pred_check_branch
      %29 = sbr.rel (0) target = $region21
    $region20: #{_lambda_.1} parent=1 // pred_region
      _
    $region21: #{_lambda_.1} parent=1 // pred_fallthru
      _
    // Predicated region
    $region22: #{_lambda_.1} parent=1 // pred_check
      _
    $region23: #{_lambda_.1} parent=1 // pred_check_branch
      %31 = sbr.rel (0) target = $region25
    $region24: #{_lambda_.1} parent=1 // pred_region
      _
    $region25: #{_lambda_.1} parent=1 // pred_fallthru
      _
    // Predicated region
    $region26: #{_lambda_.1} parent=1 // pred_check
      _
    $region27: #{_lambda_.1} parent=1 // pred_check_branch
      %33 = sbr.rel (0) target = $region29
    $region28: #{_lambda_.1} parent=1 // pred_region
      _
    $region29: #{_lambda_.1} parent=1 // pred_fallthru
      _
    // Predicated region
    $region30: #{_lambda_.1} parent=1 // pred_check
      _
    $region31: #{_lambda_.1} parent=1 // pred_check_branch
      %35 = sbr.rel (0) target = $region33
    $region32: #{_lambda_.1} parent=1 // pred_region
      _
    $region33: #{_lambda_.1} parent=1 // pred_fallthru
      _
    // Predicated region
    $region34: #{_lambda_.1} parent=1 // pred_check
      _
    $region35: #{_lambda_.1} parent=1 // pred_check_branch
      %37 = sbr.rel (0) target = $region37
    $region36: #{_lambda_.1} parent=1 // pred_region
      _
    $region37: #{_lambda_.1} parent=1 // pred_fallthru
      _
    // Predicated region
    $region38: #{_lambda_.1} parent=1 // pred_check
      _
    $region39: #{_lambda_.1} parent=1 // pred_check_branch
      %39 = sbr.rel (0) target = $region41
    $region40: #{_lambda_.1} parent=1 // pred_region
      _
    $region41: #{_lambda_.1} parent=1 // pred_fallthru
      _
    // Predicated region
    $region42: #{_lambda_.1} parent=1 // pred_check
      _
    $region43: #{_lambda_.1} parent=1 // pred_check_branch
      %41 = sbr.rel (0) target = $region45
    $region44: #{_lambda_.1} parent=1 // pred_region
      _
    $region45: #{_lambda_.1} parent=1 // pred_fallthru
      _
    // Predicated region
    $region46: #{_lambda_.1} parent=1 // pred_check
      _
    $region47: #{_lambda_.1} parent=1 // pred_check_branch
      %43 = sbr.rel (0) target = $region49
    $region48: #{_lambda_.1} parent=1 // pred_region
      _
    $region49: #{_lambda_.1} parent=1 // pred_fallthru
      _
    // Predicated region
    $region50: #{_lambda_.1} parent=1 // pred_check
      _
    $region51: #{_lambda_.1} parent=1 // pred_check_branch
      %45 = sbr.rel (0) target = $region53
    $region52: #{_lambda_.1} parent=1 // pred_region
      _
    $region53: #{_lambda_.1} parent=1 // pred_fallthru
      _
    // Predicated region
    $region54: #{_lambda_.1} parent=1 // pred_check
      _
    $region55: #{_lambda_.1} parent=1 // pred_check_branch
      %47 = sbr.rel (0) target = $region57
    $region56: #{_lambda_.1} parent=1 // pred_region
      _
    $region57: #{_lambda_.1} parent=1 // pred_fallthru
      _
    %v48 = vld [vmem:[%s0] sm:$0xff]
    %v49 = vld [vmem:[%s0 + $0x8] sm:$0xff]
    %v50 = vld [vmem:[%s0 + $0x10] sm:$0xff]
    %v51 = vld [vmem:[%s0 + $0x18] sm:$0xff]
    %v52 = vld [vmem:[%s0 + $0x20] sm:$0xf]
    %v53 = vld [vmem:[%s2] sm:$0xff]
    %v54 = vld [vmem:[%s2 + $0x8] sm:$0xff]
    %v55 = vld [vmem:[%s2 + $0x10] sm:$0xff]
    %v56 = vld [vmem:[%s2 + $0x18] sm:$0xff]
    %v57 = vld [vmem:[%s2 + $0x20] sm:$0xff]
    %v58 = vld [vmem:[%s2 + $0x28] sm:$0xff]
    %v59 = vld [vmem:[%s3] sm:$0x7]
    %vm65 = vcmask 1046528
    %v66 = vrot.slane %v48, 1
    %v67 = vrot.slane %v49, 1
    %v68 = vsel %vm65, %v66, %v67
    %v69 = vrot.slane %v50, 1
    %v70 = vsel %vm65, %v67, %v69
    %v71 = vrot.slane %v51, 1
    %v72 = vsel %vm65, %v69, %v71
    %v73 = vrot.slane %v52, 1
    %v74 = vsel %vm65, %v71, %v73
    %vm75 = vcmask 130048
    %v76 = vsel %vm75, %v68, 0
    %v78 = vsel %vm75, %v70, 0
    %v80 = vsel %vm75, %v72, 0
    %v82 = vsel %vm75, %v74, 0
    %v84 = vsel %vm75, %v73, 0
    %86 = vmatprep.subr.mxu0 0.0
    %87 = vmatpush1.msra.mxu0 0.0
    %88 = vmatprep.subr.mxu0 0.0
    %89 = vmatpush1.msra.mxu0 0.0
    %90 = vmatprep.subr.mxu0 0.0
    %91 = vmatpush1.msra.mxu0 0.0
    %92 = vmatprep.subr.mxu0 0.0
    %93 = vmatpush1.msra.mxu0 0.0
    %94 = vmatprep.subr.mxu0 0.0
    %95 = vmatpush1.msra.mxu0 0.0
    %96 = vmatprep.subr.mxu0 0.0
    %97 = vmatpush1.msra.mxu0 0.0
    %98 = vmatprep.subr.mxu0 0.0
    %99 = vmatpush1.msra.mxu0 0.0
    %100 = vmatprep.subr.mxu0 0.0
    %101 = vmatpush1.msra.mxu0 0.0
    %102 = vmatprep.subr.mxu0 0.0
    %103 = vmatpush1.msra.mxu0 0.0
    %104 = vmatprep.subr.mxu0 0.0
    %105 = vmatpush1.msra.mxu0 0.0
    %106 = vmatprep.subr.mxu0 0.0
    %107 = vmatpush1.msra.mxu0 0.0
    %108 = vmatprep.subr.mxu0 0.0
    %109 = vmatpush1.msra.mxu0 0.0
    %110 = vmatprep.subr.mxu0 0.0
    %111 = vmatpush1.msra.mxu0 0.0
    %112 = vmatprep.subr.mxu0 0.0
    %113 = vmatpush1.msra.mxu0 0.0
    %114 = vmatprep.subr.mxu0 0.0
    %115 = vmatpush1.msra.mxu0 %v56
    %116 = vmatprep.subr.mxu0 0.0
    %117 = vmatpush1.msra.mxu0 %v55
    %118 = vmatprep.subr.mxu0 0.0
    %119 = vmatpush2.msra.mxu0 0.0
    %120 = vmatprep.subr.mxu0 0.0
    %121 = vmatpush2.msra.mxu0 0.0
    %122 = vmatprep.subr.mxu0 0.0
    %123 = vmatpush2.msra.mxu0 0.0
    %124 = vmatprep.subr.mxu0 0.0
    %125 = vmatpush2.msra.mxu0 0.0
    %126 = vmatprep.subr.mxu0 0.0
    %127 = vmatpush2.msra.mxu0 0.0
    %128 = vmatprep.subr.mxu0 0.0
    %129 = vmatpush2.msra.mxu0 0.0
    %130 = vmatprep.subr.mxu0 0.0
    %131 = vmatpush2.msra.mxu0 0.0
    %132 = vmatprep.subr.mxu0 0.0
    %133 = vmatpush2.msra.mxu0 0.0
    %134 = vmatprep.subr.mxu0 0.0
    %135 = vmatpush2.msra.mxu0 0.0
    %136 = vmatprep.subr.mxu0 0.0
    %137 = vmatpush2.msra.mxu0 0.0
    %138 = vmatprep.subr.mxu0 0.0
    %139 = vmatpush2.msra.mxu0 0.0
    %140 = vmatprep.subr.mxu0 0.0
    %141 = vmatpush2.msra.mxu0 0.0
    %142 = vmatprep.subr.mxu0 0.0
    %143 = vmatpush2.msra.mxu0 0.0
    %144 = vmatprep.subr.mxu0 0.0
    %145 = vmatpush2.msra.mxu0 0.0
    %146 = vmatprep.subr.mxu0 0.0
    %147 = vmatpush2.msra.mxu0 0.0
    %148 = vmatprep.subr.mxu0 0.0
    %149 = vmatpush2.msra.mxu0 0.0
    %150 = vmatprep.mubr.f32.mxu0 0.0
    %151 = vmatmul.mubr.f32.gmra.mxu0 %v76
    %v152 = vpop.f32.mrf.mxu0
    %v153 = vadd.f32 0.0, %v152
    %v154 = vpop.f32.mrf.mxu0
    %155 = vmatprep.mubr.f32.mxu0 0.0
    %156 = vmatmul.mubr.f32.gmra.mxu0 %v78
    %v157 = vpop.f32.mrf.mxu0
    %v158 = vadd.f32 0.0, %v157
    %v159 = vpop.f32.mrf.mxu0
    %160 = vmatprep.mubr.f32.mxu0 0.0
    %161 = vmatmul.mubr.f32.gmra.mxu0 %v80
    %v162 = vpop.f32.mrf.mxu0
    %v163 = vadd.f32 0.0, %v162
    %v164 = vpop.f32.mrf.mxu0
    %165 = vmatprep.mubr.f32.mxu0 0.0
    %166 = vmatmul.mubr.f32.gmra.mxu0 %v82
    %v167 = vpop.f32.mrf.mxu0
    %v168 = vadd.f32 0.0, %v167
    %v169 = vpop.f32.mrf.mxu0
    %170 = vmatprep.mubr.f32.mxu0 0.0
    %171 = vmatmul.mubr.f32.gmra.mxu0 %v84
    %v172 = vpop.f32.mrf.mxu0
    %v173 = vadd.f32 0.0, %v172
    %v174 = vpop.f32.mrf.mxu0
    %175 = vdwg.mxu0
    %v176 = vsel %vm75, %v48, 0
    %v178 = vsel %vm75, %v49, 0
    %v180 = vsel %vm75, %v50, 0
    %v182 = vsel %vm75, %v51, 0
    %v184 = vsel %vm75, %v52, 0
    %186 = vmatprep.subr.mxu0 0.0
    %187 = vmatpush1.msra.mxu0 0.0
    %188 = vmatprep.subr.mxu0 0.0
    %189 = vmatpush1.msra.mxu0 0.0
    %190 = vmatprep.subr.mxu0 0.0
    %191 = vmatpush1.msra.mxu0 0.0
    %192 = vmatprep.subr.mxu0 0.0
    %193 = vmatpush1.msra.mxu0 0.0
    %194 = vmatprep.subr.mxu0 0.0
    %195 = vmatpush1.msra.mxu0 0.0
    %196 = vmatprep.subr.mxu0 0.0
    %197 = vmatpush1.msra.mxu0 0.0
    %198 = vmatprep.subr.mxu0 0.0
    %199 = vmatpush1.msra.mxu0 0.0
    %200 = vmatprep.subr.mxu0 0.0
    %201 = vmatpush1.msra.mxu0 0.0
    %202 = vmatprep.subr.mxu0 0.0
    %203 = vmatpush1.msra.mxu0 0.0
    %204 = vmatprep.subr.mxu0 0.0
    %205 = vmatpush1.msra.mxu0 0.0
    %206 = vmatprep.subr.mxu0 0.0
    %207 = vmatpush1.msra.mxu0 0.0
    %208 = vmatprep.subr.mxu0 0.0
    %209 = vmatpush1.msra.mxu0 0.0
    %210 = vmatprep.subr.mxu0 0.0
    %211 = vmatpush1.msra.mxu0 0.0
    %212 = vmatprep.subr.mxu0 0.0
    %213 = vmatpush1.msra.mxu0 0.0
    %214 = vmatprep.subr.mxu0 0.0
    %215 = vmatpush1.msra.mxu0 %v54
    %216 = vmatprep.subr.mxu0 0.0
    %217 = vmatpush1.msra.mxu0 %v53
    %218 = vmatprep.subr.mxu0 0.0
    %219 = vmatpush2.msra.mxu0 0.0
    %220 = vmatprep.subr.mxu0 0.0
    %221 = vmatpush2.msra.mxu0 0.0
    %222 = vmatprep.subr.mxu0 0.0
    %223 = vmatpush2.msra.mxu0 0.0
    %224 = vmatprep.subr.mxu0 0.0
    %225 = vmatpush2.msra.mxu0 0.0
    %226 = vmatprep.subr.mxu0 0.0
    %227 = vmatpush2.msra.mxu0 0.0
    %228 = vmatprep.subr.mxu0 0.0
    %229 = vmatpush2.msra.mxu0 0.0
    %230 = vmatprep.subr.mxu0 0.0
    %231 = vmatpush2.msra.mxu0 0.0
    %232 = vmatprep.subr.mxu0 0.0
    %233 = vmatpush2.msra.mxu0 0.0
    %234 = vmatprep.subr.mxu0 0.0
    %235 = vmatpush2.msra.mxu0 0.0
    %236 = vmatprep.subr.mxu0 0.0
    %237 = vmatpush2.msra.mxu0 0.0
    %238 = vmatprep.subr.mxu0 0.0
    %239 = vmatpush2.msra.mxu0 0.0
    %240 = vmatprep.subr.mxu0 0.0
    %241 = vmatpush2.msra.mxu0 0.0
    %242 = vmatprep.subr.mxu0 0.0
    %243 = vmatpush2.msra.mxu0 0.0
    %244 = vmatprep.subr.mxu0 0.0
    %245 = vmatpush2.msra.mxu0 0.0
    %246 = vmatprep.subr.mxu0 0.0
    %247 = vmatpush2.msra.mxu0 0.0
    %248 = vmatprep.subr.mxu0 0.0
    %249 = vmatpush2.msra.mxu0 0.0
    %250 = vmatprep.mubr.f32.mxu0 0.0
    %251 = vmatmul.mubr.f32.gmra.mxu0 %v176
    %v252 = vpop.f32.mrf.mxu0
    %v253 = vadd.f32 %v153, %v252
    %v254 = vpop.f32.mrf.mxu0
    %255 = vmatprep.mubr.f32.mxu0 0.0
    %256 = vmatmul.mubr.f32.gmra.mxu0 %v178
    %v257 = vpop.f32.mrf.mxu0
    %v258 = vadd.f32 %v158, %v257
    %v259 = vpop.f32.mrf.mxu0
    %260 = vmatprep.mubr.f32.mxu0 0.0
    %261 = vmatmul.mubr.f32.gmra.mxu0 %v180
    %v262 = vpop.f32.mrf.mxu0
    %v263 = vadd.f32 %v163, %v262
    %v264 = vpop.f32.mrf.mxu0
    %265 = vmatprep.mubr.f32.mxu0 0.0
    %266 = vmatmul.mubr.f32.gmra.mxu0 %v182
    %v267 = vpop.f32.mrf.mxu0
    %v268 = vadd.f32 %v168, %v267
    %v269 = vpop.f32.mrf.mxu0
    %270 = vmatprep.mubr.f32.mxu0 0.0
    %271 = vmatmul.mubr.f32.gmra.mxu0 %v184
    %v272 = vpop.f32.mrf.mxu0
    %v273 = vadd.f32 %v173, %v272
    %v274 = vpop.f32.mrf.mxu0
    %275 = vdwg.mxu0
    %vm276 = vcmask 1045504
    %v277 = vrot.slane %v48, 2
    %v278 = vrot.slane %v49, 2
    %v279 = vsel %vm276, %v277, %v278
    %v280 = vrot.slane %v50, 2
    %v281 = vsel %vm276, %v278, %v280
    %v282 = vrot.slane %v51, 2
    %v283 = vsel %vm276, %v280, %v282
    %v284 = vrot.slane %v52, 2
    %v285 = vsel %vm276, %v282, %v284
    %v286 = vsel %vm75, %v279, 0
    %v288 = vsel %vm75, %v281, 0
    %v290 = vsel %vm75, %v283, 0
    %v292 = vsel %vm75, %v285, 0
    %v294 = vsel %vm75, %v284, 0
    %296 = vmatprep.subr.mxu0 0.0
    %297 = vmatpush1.msra.mxu0 0.0
    %298 = vmatprep.subr.mxu0 0.0
    %299 = vmatpush1.msra.mxu0 0.0
    %300 = vmatprep.subr.mxu0 0.0
    %301 = vmatpush1.msra.mxu0 0.0
    %302 = vmatprep.subr.mxu0 0.0
    %303 = vmatpush1.msra.mxu0 0.0
    %304 = vmatprep.subr.mxu0 0.0
    %305 = vmatpush1.msra.mxu0 0.0
    %306 = vmatprep.subr.mxu0 0.0
    %307 = vmatpush1.msra.mxu0 0.0
    %308 = vmatprep.subr.mxu0 0.0
    %309 = vmatpush1.msra.mxu0 0.0
    %310 = vmatprep.subr.mxu0 0.0
    %311 = vmatpush1.msra.mxu0 0.0
    %312 = vmatprep.subr.mxu0 0.0
    %313 = vmatpush1.msra.mxu0 0.0
    %314 = vmatprep.subr.mxu0 0.0
    %315 = vmatpush1.msra.mxu0 0.0
    %316 = vmatprep.subr.mxu0 0.0
    %317 = vmatpush1.msra.mxu0 0.0
    %318 = vmatprep.subr.mxu0 0.0
    %319 = vmatpush1.msra.mxu0 0.0
    %320 = vmatprep.subr.mxu0 0.0
    %321 = vmatpush1.msra.mxu0 0.0
    %322 = vmatprep.subr.mxu0 0.0
    %323 = vmatpush1.msra.mxu0 0.0
    %324 = vmatprep.subr.mxu0 0.0
    %325 = vmatpush1.msra.mxu0 %v58
    %326 = vmatprep.subr.mxu0 0.0
    %327 = vmatpush1.msra.mxu0 %v57
    %328 = vmatprep.subr.mxu0 0.0
    %329 = vmatpush2.msra.mxu0 0.0
    %330 = vmatprep.subr.mxu0 0.0
    %331 = vmatpush2.msra.mxu0 0.0
    %332 = vmatprep.subr.mxu0 0.0
    %333 = vmatpush2.msra.mxu0 0.0
    %334 = vmatprep.subr.mxu0 0.0
    %335 = vmatpush2.msra.mxu0 0.0
    %336 = vmatprep.subr.mxu0 0.0
    %337 = vmatpush2.msra.mxu0 0.0
    %338 = vmatprep.subr.mxu0 0.0
    %339 = vmatpush2.msra.mxu0 0.0
    %340 = vmatprep.subr.mxu0 0.0
    %341 = vmatpush2.msra.mxu0 0.0
    %342 = vmatprep.subr.mxu0 0.0
    %343 = vmatpush2.msra.mxu0 0.0
    %344 = vmatprep.subr.mxu0 0.0
    %345 = vmatpush2.msra.mxu0 0.0
    %346 = vmatprep.subr.mxu0 0.0
    %347 = vmatpush2.msra.mxu0 0.0
    %348 = vmatprep.subr.mxu0 0.0
    %349 = vmatpush2.msra.mxu0 0.0
    %350 = vmatprep.subr.mxu0 0.0
    %351 = vmatpush2.msra.mxu0 0.0
    %352 = vmatprep.subr.mxu0 0.0
    %353 = vmatpush2.msra.mxu0 0.0
    %354 = vmatprep.subr.mxu0 0.0
    %355 = vmatpush2.msra.mxu0 0.0
    %356 = vmatprep.subr.mxu0 0.0
    %357 = vmatpush2.msra.mxu0 0.0
    %358 = vmatprep.subr.mxu0 0.0
    %359 = vmatpush2.msra.mxu0 0.0
    %360 = vmatprep.mubr.f32.mxu0 0.0
    %361 = vmatmul.mubr.f32.gmra.mxu0 %v286
    %v362 = vpop.f32.mrf.mxu0
    %v363 = vadd.f32 0.0, %v362
    %v364 = vpop.f32.mrf.mxu0
    %365 = vmatprep.mubr.f32.mxu0 0.0
    %366 = vmatmul.mubr.f32.gmra.mxu0 %v288
    %v367 = vpop.f32.mrf.mxu0
    %v368 = vadd.f32 0.0, %v367
    %v369 = vpop.f32.mrf.mxu0
    %370 = vmatprep.mubr.f32.mxu0 0.0
    %371 = vmatmul.mubr.f32.gmra.mxu0 %v290
    %v372 = vpop.f32.mrf.mxu0
    %v373 = vadd.f32 0.0, %v372
    %v374 = vpop.f32.mrf.mxu0
    %375 = vmatprep.mubr.f32.mxu0 0.0
    %376 = vmatmul.mubr.f32.gmra.mxu0 %v292
    %v377 = vpop.f32.mrf.mxu0
    %v378 = vadd.f32 0.0, %v377
    %v379 = vpop.f32.mrf.mxu0
    %380 = vmatprep.mubr.f32.mxu0 0.0
    %381 = vmatmul.mubr.f32.gmra.mxu0 %v294
    %v382 = vpop.f32.mrf.mxu0
    %v383 = vadd.f32 0.0, %v382
    %v384 = vpop.f32.mrf.mxu0
    %385 = vdwg.mxu0
    %v386 = vadd.f32 %v253, %v363
    %v387 = vadd.f32 %v258, %v368
    %v388 = vadd.f32 %v263, %v373
    %v389 = vadd.f32 %v268, %v378
    %v390 = vadd.f32 %v273, %v383
    %v391 = vlaneseq
    %v392 = vshrl.u32 %v391, 7
    %v393 = vsub.s32 0, %v392
    %v394 = vrot.slane %v59, %v393
    %v395 = vadd.f32 %v386, %v394
    %v396 = vadd.f32 %v387, %v394
    %v397 = vadd.f32 %v388, %v394
    %v398 = vadd.f32 %v389, %v394
    %v399 = vadd.f32 %v390, %v394
    %v400 = vmax.f32 %v395, 0.0
    %v401 = vmax.f32 %v396, 0.0
    %v402 = vmax.f32 %v397, 0.0
    %v403 = vmax.f32 %v398, 0.0
    %v404 = vmax.f32 %v399, 0.0
    %v405 = vlaneseq
    %v406 = vshrl.u32 %v405, 7
    %v407 = vsub.s32 1, %v406
    %v408 = vrot.slane %v59, %v407
    %v409 = vmul.f32 %v400, %v408
    %v410 = vmul.f32 %v401, %v408
    %v411 = vmul.f32 %v402, %v408
    %v412 = vmul.f32 %v403, %v408
    %v413 = vmul.f32 %v404, %v408
    %v414 = vlaneseq
    %v415 = vshrl.u32 %v414, 7
    %v416 = vsub.s32 2, %v415
    %v417 = vrot.slane %v59, %v416
    %v418 = vadd.f32 %v409, %v417
    %v419 = vadd.f32 %v410, %v417
    %v420 = vadd.f32 %v411, %v417
    %v421 = vadd.f32 %v412, %v417
    %v422 = vadd.f32 %v413, %v417
    %v423 = vld [vmem:[%s4] sm:$0xff]
    %v424 = vld [vmem:[%s4 + $0x8] sm:$0xff]
    %v425 = vld [vmem:[%s4 + $0x10] sm:$0xff]
    %v426 = vld [vmem:[%s4 + $0x18] sm:$0xff]
    %v427 = vld [vmem:[%s4 + $0x20] sm:$0xff]
    %v428 = vld [vmem:[%s4 + $0x28] sm:$0xff]
    %v429 = vld [vmem:[%s4 + $0x30] sm:$0xff]
    %v430 = vld [vmem:[%s4 + $0x38] sm:$0xff]
    %v431 = vld [vmem:[%s4 + $0x40] sm:$0xff]
    %v432 = vld [vmem:[%s4 + $0x48] sm:$0xff]
    %v433 = vld [vmem:[%s4 + $0x50] sm:$0xff]
    %v434 = vld [vmem:[%s4 + $0x58] sm:$0xff]
    %v435 = vld [vmem:[%s5] sm:$0x7]
    %v441 = vrot.slane %v418, 1
    %v442 = vrot.slane %v419, 1
    %v443 = vsel %vm65, %v441, %v442
    %v444 = vrot.slane %v420, 1
    %v445 = vsel %vm65, %v442, %v444
    %v446 = vrot.slane %v421, 1
    %v447 = vsel %vm65, %v444, %v446
    %v448 = vrot.slane %v422, 1
    %v449 = vsel %vm65, %v446, %v448
    %vm450 = vcmask 261120
    %v451 = vsel %vm450, %v443, 0
    %v453 = vsel %vm450, %v445, 0
    %v455 = vsel %vm450, %v447, 0
    %v457 = vsel %vm450, %v449, 0
    %459 = vmatprep.subr.mxu0 0.0
    %460 = vmatpush1.msra.mxu0 0.0
    %461 = vmatprep.subr.mxu0 0.0
    %462 = vmatpush1.msra.mxu0 0.0
    %463 = vmatprep.subr.mxu0 0.0
    %464 = vmatpush1.msra.mxu0 0.0
    %465 = vmatprep.subr.mxu0 0.0
    %466 = vmatpush1.msra.mxu0 0.0
    %467 = vmatprep.subr.mxu0 0.0
    %468 = vmatpush1.msra.mxu0 0.0
    %469 = vmatprep.subr.mxu0 0.0
    %470 = vmatpush1.msra.mxu0 0.0
    %471 = vmatprep.subr.mxu0 0.0
    %472 = vmatpush1.msra.mxu0 0.0
    %473 = vmatprep.subr.mxu0 0.0
    %474 = vmatpush1.msra.mxu0 0.0
    %475 = vmatprep.subr.mxu0 0.0
    %476 = vmatpush1.msra.mxu0 0.0
    %477 = vmatprep.subr.mxu0 0.0
    %478 = vmatpush1.msra.mxu0 0.0
    %479 = vmatprep.subr.mxu0 0.0
    %480 = vmatpush1.msra.mxu0 0.0
    %481 = vmatprep.subr.mxu0 0.0
    %482 = vmatpush1.msra.mxu0 0.0
    %483 = vmatprep.subr.mxu0 0.0
    %484 = vmatpush1.msra.mxu0 %v430
    %485 = vmatprep.subr.mxu0 0.0
    %486 = vmatpush1.msra.mxu0 %v429
    %487 = vmatprep.subr.mxu0 0.0
    %488 = vmatpush1.msra.mxu0 %v428
    %489 = vmatprep.subr.mxu0 0.0
    %490 = vmatpush1.msra.mxu0 %v427
    %491 = vmatprep.subr.mxu0 0.0
    %492 = vmatpush2.msra.mxu0 0.0
    %493 = vmatprep.subr.mxu0 0.0
    %494 = vmatpush2.msra.mxu0 0.0
    %495 = vmatprep.subr.mxu0 0.0
    %496 = vmatpush2.msra.mxu0 0.0
    %497 = vmatprep.subr.mxu0 0.0
    %498 = vmatpush2.msra.mxu0 0.0
    %499 = vmatprep.subr.mxu0 0.0
    %500 = vmatpush2.msra.mxu0 0.0
    %501 = vmatprep.subr.mxu0 0.0
    %502 = vmatpush2.msra.mxu0 0.0
    %503 = vmatprep.subr.mxu0 0.0
    %504 = vmatpush2.msra.mxu0 0.0
    %505 = vmatprep.subr.mxu0 0.0
    %506 = vmatpush2.msra.mxu0 0.0
    %507 = vmatprep.subr.mxu0 0.0
    %508 = vmatpush2.msra.mxu0 0.0
    %509 = vmatprep.subr.mxu0 0.0
    %510 = vmatpush2.msra.mxu0 0.0
    %511 = vmatprep.subr.mxu0 0.0
    %512 = vmatpush2.msra.mxu0 0.0
    %513 = vmatprep.subr.mxu0 0.0
    %514 = vmatpush2.msra.mxu0 0.0
    %515 = vmatprep.subr.mxu0 0.0
    %516 = vmatpush2.msra.mxu0 0.0
    %517 = vmatprep.subr.mxu0 0.0
    %518 = vmatpush2.msra.mxu0 0.0
    %519 = vmatprep.subr.mxu0 0.0
    %520 = vmatpush2.msra.mxu0 0.0
    %521 = vmatprep.subr.mxu0 0.0
    %522 = vmatpush2.msra.mxu0 0.0
    %523 = vmatprep.mubr.f32.mxu0 0.0
    %524 = vmatmul.mubr.f32.gmra.mxu0 %v451
    %v525 = vpop.f32.mrf.mxu0
    %v526 = vadd.f32 0.0, %v525
    %v527 = vpop.f32.mrf.mxu0
    %528 = vmatprep.mubr.f32.mxu0 0.0
    %529 = vmatmul.mubr.f32.gmra.mxu0 %v453
    %v530 = vpop.f32.mrf.mxu0
    %v531 = vadd.f32 0.0, %v530
    %v532 = vpop.f32.mrf.mxu0
    %533 = vmatprep.mubr.f32.mxu0 0.0
    %534 = vmatmul.mubr.f32.gmra.mxu0 %v455
    %v535 = vpop.f32.mrf.mxu0
    %v536 = vadd.f32 0.0, %v535
    %v537 = vpop.f32.mrf.mxu0
    %538 = vmatprep.mubr.f32.mxu0 0.0
    %539 = vmatmul.mubr.f32.gmra.mxu0 %v457
    %v540 = vpop.f32.mrf.mxu0
    %v541 = vadd.f32 0.0, %v540
    %v542 = vpop.f32.mrf.mxu0
    %543 = vdwg.mxu0
    %v544 = vsel %vm450, %v418, 0
    %v546 = vsel %vm450, %v419, 0
    %v548 = vsel %vm450, %v420, 0
    %v550 = vsel %vm450, %v421, 0
    %552 = vmatprep.subr.mxu0 0.0
    %553 = vmatpush1.msra.mxu0 0.0
    %554 = vmatprep.subr.mxu0 0.0
    %555 = vmatpush1.msra.mxu0 0.0
    %556 = vmatprep.subr.mxu0 0.0
    %557 = vmatpush1.msra.mxu0 0.0
    %558 = vmatprep.subr.mxu0 0.0
    %559 = vmatpush1.msra.mxu0 0.0
    %560 = vmatprep.subr.mxu0 0.0
    %561 = vmatpush1.msra.mxu0 0.0
    %562 = vmatprep.subr.mxu0 0.0
    %563 = vmatpush1.msra.mxu0 0.0
    %564 = vmatprep.subr.mxu0 0.0
    %565 = vmatpush1.msra.mxu0 0.0
    %566 = vmatprep.subr.mxu0 0.0
    %567 = vmatpush1.msra.mxu0 0.0
    %568 = vmatprep.subr.mxu0 0.0
    %569 = vmatpush1.msra.mxu0 0.0
    %570 = vmatprep.subr.mxu0 0.0
    %571 = vmatpush1.msra.mxu0 0.0
    %572 = vmatprep.subr.mxu0 0.0
    %573 = vmatpush1.msra.mxu0 0.0
    %574 = vmatprep.subr.mxu0 0.0
    %575 = vmatpush1.msra.mxu0 0.0
    %576 = vmatprep.subr.mxu0 0.0
    %577 = vmatpush1.msra.mxu0 %v426
    %578 = vmatprep.subr.mxu0 0.0
    %579 = vmatpush1.msra.mxu0 %v425
    %580 = vmatprep.subr.mxu0 0.0
    %581 = vmatpush1.msra.mxu0 %v424
    %582 = vmatprep.subr.mxu0 0.0
    %583 = vmatpush1.msra.mxu0 %v423
    %584 = vmatprep.subr.mxu0 0.0
    %585 = vmatpush2.msra.mxu0 0.0
    %586 = vmatprep.subr.mxu0 0.0
    %587 = vmatpush2.msra.mxu0 0.0
    %588 = vmatprep.subr.mxu0 0.0
    %589 = vmatpush2.msra.mxu0 0.0
    %590 = vmatprep.subr.mxu0 0.0
    %591 = vmatpush2.msra.mxu0 0.0
    %592 = vmatprep.subr.mxu0 0.0
    %593 = vmatpush2.msra.mxu0 0.0
    %594 = vmatprep.subr.mxu0 0.0
    %595 = vmatpush2.msra.mxu0 0.0
    %596 = vmatprep.subr.mxu0 0.0
    %597 = vmatpush2.msra.mxu0 0.0
    %598 = vmatprep.subr.mxu0 0.0
    %599 = vmatpush2.msra.mxu0 0.0
    %600 = vmatprep.subr.mxu0 0.0
    %601 = vmatpush2.msra.mxu0 0.0
    %602 = vmatprep.subr.mxu0 0.0
    %603 = vmatpush2.msra.mxu0 0.0
    %604 = vmatprep.subr.mxu0 0.0
    %605 = vmatpush2.msra.mxu0 0.0
    %606 = vmatprep.subr.mxu0 0.0
    %607 = vmatpush2.msra.mxu0 0.0
    %608 = vmatprep.subr.mxu0 0.0
    %609 = vmatpush2.msra.mxu0 0.0
    %610 = vmatprep.subr.mxu0 0.0
    %611 = vmatpush2.msra.mxu0 0.0
    %612 = vmatprep.subr.mxu0 0.0
    %613 = vmatpush2.msra.mxu0 0.0
    %614 = vmatprep.subr.mxu0 0.0
    %615 = vmatpush2.msra.mxu0 0.0
    %616 = vmatprep.mubr.f32.mxu0 0.0
    %617 = vmatmul.mubr.f32.gmra.mxu0 %v544
    %v618 = vpop.f32.mrf.mxu0
    %v619 = vadd.f32 %v526, %v618
    %v620 = vpop.f32.mrf.mxu0
    %621 = vmatprep.mubr.f32.mxu0 0.0
    %622 = vmatmul.mubr.f32.gmra.mxu0 %v546
    %v623 = vpop.f32.mrf.mxu0
    %v624 = vadd.f32 %v531, %v623
    %v625 = vpop.f32.mrf.mxu0
    %626 = vmatprep.mubr.f32.mxu0 0.0
    %627 = vmatmul.mubr.f32.gmra.mxu0 %v548
    %v628 = vpop.f32.mrf.mxu0
    %v629 = vadd.f32 %v536, %v628
    %v630 = vpop.f32.mrf.mxu0
    %631 = vmatprep.mubr.f32.mxu0 0.0
    %632 = vmatmul.mubr.f32.gmra.mxu0 %v550
    %v633 = vpop.f32.mrf.mxu0
    %v634 = vadd.f32 %v541, %v633
    %v635 = vpop.f32.mrf.mxu0
    %636 = vdwg.mxu0
    %v637 = vrot.slane %v418, 2
    %v638 = vrot.slane %v419, 2
    %v639 = vsel %vm276, %v637, %v638
    %v640 = vrot.slane %v420, 2
    %v641 = vsel %vm276, %v638, %v640
    %v642 = vrot.slane %v421, 2
    %v643 = vsel %vm276, %v640, %v642
    %v644 = vrot.slane %v422, 2
    %v645 = vsel %vm276, %v642, %v644
    %v646 = vsel %vm450, %v639, 0
    %v648 = vsel %vm450, %v641, 0
    %v650 = vsel %vm450, %v643, 0
    %v652 = vsel %vm450, %v645, 0
    %654 = vmatprep.subr.mxu0 0.0
    %655 = vmatpush1.msra.mxu0 0.0
    %656 = vmatprep.subr.mxu0 0.0
    %657 = vmatpush1.msra.mxu0 0.0
    %658 = vmatprep.subr.mxu0 0.0
    %659 = vmatpush1.msra.mxu0 0.0
    %660 = vmatprep.subr.mxu0 0.0
    %661 = vmatpush1.msra.mxu0 0.0
    %662 = vmatprep.subr.mxu0 0.0
    %663 = vmatpush1.msra.mxu0 0.0
    %664 = vmatprep.subr.mxu0 0.0
    %665 = vmatpush1.msra.mxu0 0.0
    %666 = vmatprep.subr.mxu0 0.0
    %667 = vmatpush1.msra.mxu0 0.0
    %668 = vmatprep.subr.mxu0 0.0
    %669 = vmatpush1.msra.mxu0 0.0
    %670 = vmatprep.subr.mxu0 0.0
    %671 = vmatpush1.msra.mxu0 0.0
    %672 = vmatprep.subr.mxu0 0.0
    %673 = vmatpush1.msra.mxu0 0.0
    %674 = vmatprep.subr.mxu0 0.0
    %675 = vmatpush1.msra.mxu0 0.0
    %676 = vmatprep.subr.mxu0 0.0
    %677 = vmatpush1.msra.mxu0 0.0
    %678 = vmatprep.subr.mxu0 0.0
    %679 = vmatpush1.msra.mxu0 %v434
    %680 = vmatprep.subr.mxu0 0.0
    %681 = vmatpush1.msra.mxu0 %v433
    %682 = vmatprep.subr.mxu0 0.0
    %683 = vmatpush1.msra.mxu0 %v432
    %684 = vmatprep.subr.mxu0 0.0
    %685 = vmatpush1.msra.mxu0 %v431
    %686 = vmatprep.subr.mxu0 0.0
    %687 = vmatpush2.msra.mxu0 0.0
    %688 = vmatprep.subr.mxu0 0.0
    %689 = vmatpush2.msra.mxu0 0.0
    %690 = vmatprep.subr.mxu0 0.0
    %691 = vmatpush2.msra.mxu0 0.0
    %692 = vmatprep.subr.mxu0 0.0
    %693 = vmatpush2.msra.mxu0 0.0
    %694 = vmatprep.subr.mxu0 0.0
    %695 = vmatpush2.msra.mxu0 0.0
    %696 = vmatprep.subr.mxu0 0.0
    %697 = vmatpush2.msra.mxu0 0.0
    %698 = vmatprep.subr.mxu0 0.0
    %699 = vmatpush2.msra.mxu0 0.0
    %700 = vmatprep.subr.mxu0 0.0
    %701 = vmatpush2.msra.mxu0 0.0
    %702 = vmatprep.subr.mxu0 0.0
    %703 = vmatpush2.msra.mxu0 0.0
    %704 = vmatprep.subr.mxu0 0.0
    %705 = vmatpush2.msra.mxu0 0.0
    %706 = vmatprep.subr.mxu0 0.0
    %707 = vmatpush2.msra.mxu0 0.0
    %708 = vmatprep.subr.mxu0 0.0
    %709 = vmatpush2.msra.mxu0 0.0
    %710 = vmatprep.subr.mxu0 0.0
    %711 = vmatpush2.msra.mxu0 0.0
    %712 = vmatprep.subr.mxu0 0.0
    %713 = vmatpush2.msra.mxu0 0.0
    %714 = vmatprep.subr.mxu0 0.0
    %715 = vmatpush2.msra.mxu0 0.0
    %716 = vmatprep.subr.mxu0 0.0
    %717 = vmatpush2.msra.mxu0 0.0
    %718 = vmatprep.mubr.f32.mxu0 0.0
    %719 = vmatmul.mubr.f32.gmra.mxu0 %v646
    %v720 = vpop.f32.mrf.mxu0
    %v721 = vadd.f32 0.0, %v720
    %v722 = vpop.f32.mrf.mxu0
    %723 = vmatprep.mubr.f32.mxu0 0.0
    %724 = vmatmul.mubr.f32.gmra.mxu0 %v648
    %v725 = vpop.f32.mrf.mxu0
    %v726 = vadd.f32 0.0, %v725
    %v727 = vpop.f32.mrf.mxu0
    %728 = vmatprep.mubr.f32.mxu0 0.0
    %729 = vmatmul.mubr.f32.gmra.mxu0 %v650
    %v730 = vpop.f32.mrf.mxu0
    %v731 = vadd.f32 0.0, %v730
    %v732 = vpop.f32.mrf.mxu0
    %733 = vmatprep.mubr.f32.mxu0 0.0
    %734 = vmatmul.mubr.f32.gmra.mxu0 %v652
    %v735 = vpop.f32.mrf.mxu0
    %v736 = vadd.f32 0.0, %v735
    %v737 = vpop.f32.mrf.mxu0
    %738 = vdwg.mxu0
    %v739 = vadd.f32 %v619, %v721
    %v740 = vadd.f32 %v624, %v726
    %v741 = vadd.f32 %v629, %v731
    %v742 = vadd.f32 %v634, %v736
    %v743 = vlaneseq
    %v744 = vshrl.u32 %v743, 7
    %v745 = vsub.s32 0, %v744
    %v746 = vrot.slane %v435, %v745
    %v747 = vadd.f32 %v739, %v746
    %v748 = vadd.f32 %v740, %v746
    %v749 = vadd.f32 %v741, %v746
    %v750 = vadd.f32 %v742, %v746
    %v751 = vmax.f32 %v747, 0.0
    %v752 = vmax.f32 %v748, 0.0
    %v753 = vmax.f32 %v749, 0.0
    %v754 = vmax.f32 %v750, 0.0
    %v755 = vlaneseq
    %v756 = vshrl.u32 %v755, 7
    %v757 = vsub.s32 1, %v756
    %v758 = vrot.slane %v435, %v757
    %v759 = vmul.f32 %v751, %v758
    %v760 = vmul.f32 %v752, %v758
    %v761 = vmul.f32 %v753, %v758
    %v762 = vmul.f32 %v754, %v758
    %v763 = vlaneseq
    %v764 = vshrl.u32 %v763, 7
    %v765 = vsub.s32 2, %v764
    %v766 = vrot.slane %v435, %v765
    %v767 = vadd.f32 %v759, %v766
    %v768 = vadd.f32 %v760, %v766
    %v769 = vadd.f32 %v761, %v766
    %v770 = vadd.f32 %v762, %v766
    %v772 = vrot.slane %v767, 1
    %v774 = vmax.f32 %v767, %v772
    %v776 = vrot.slane %v769, 1
    %v778 = vmax.f32 %v769, %v776
    %v780 = vrot.slane %v768, 1
    %v782 = vmax.f32 %v768, %v780
    %v784 = vrot.slane %v770, 1
    %v786 = vmax.f32 %v770, %v784
    %v788 = vrot.slane %v778, 7
    %v791 = vrot.slane %v786, 7
    %vm793 = vcmask 1040384
    %v794 = vsel %vm793, %v774, %v788
    %vm795 = vcmask 1041408
    %v796 = vsel %vm795, %v794, %v774
    %vm797 = vcmask 1042432
    %v798 = vsel %vm797, %v796, %v788
    %vm799 = vcmask 1043456
    %v800 = vsel %vm799, %v798, %v774
    %vm801 = vcmask 1044480
    %v802 = vsel %vm801, %v800, %v788
    %v803 = vsel %vm276, %v802, %v774
    %v804 = vsel %vm65, %v803, %v788
    %v805 = vsel %vm793, %v782, %v791
    %v806 = vsel %vm795, %v805, %v782
    %v807 = vsel %vm797, %v806, %v791
    %v808 = vld [vmem:[%s6] sm:$0xff]
    %v809 = vld [vmem:[%s6 + $0x8] sm:$0xff]
    %v810 = vld [vmem:[%s6 + $0x10] sm:$0xff]
    %v811 = vld [vmem:[%s6 + $0x18] sm:$0xff]
    %v812 = vld [vmem:[%s8] sm:$0x1]
    %v814 = vlaneseq
    %v815 = vshrl.u32 %v814, 7
    %v816 = vsub.s32 0, %v815
    %v817 = vrot.slane %v812, %v816
    %v820 = vsel %vm450, %v804, 0
    %v823 = vsel %vm450, %v807, 0
    %825 = vmatprep.subr.mxu0 0.0
    %826 = vmatpush1.msra.mxu0 0.0
    %827 = vmatprep.subr.mxu0 0.0
    %828 = vmatpush1.msra.mxu0 0.0
    %829 = vmatprep.subr.mxu0 0.0
    %830 = vmatpush1.msra.mxu0 0.0
    %831 = vmatprep.subr.mxu0 0.0
    %832 = vmatpush1.msra.mxu0 0.0
    %833 = vmatprep.subr.mxu0 0.0
    %834 = vmatpush1.msra.mxu0 0.0
    %835 = vmatprep.subr.mxu0 0.0
    %836 = vmatpush1.msra.mxu0 0.0
    %837 = vmatprep.subr.mxu0 0.0
    %838 = vmatpush1.msra.mxu0 0.0
    %839 = vmatprep.subr.mxu0 0.0
    %840 = vmatpush1.msra.mxu0 0.0
    %841 = vmatprep.subr.mxu0 0.0
    %842 = vmatpush1.msra.mxu0 0.0
    %843 = vmatprep.subr.mxu0 0.0
    %844 = vmatpush1.msra.mxu0 0.0
    %845 = vmatprep.subr.mxu0 0.0
    %846 = vmatpush1.msra.mxu0 0.0
    %847 = vmatprep.subr.mxu0 0.0
    %848 = vmatpush1.msra.mxu0 0.0
    %849 = vmatprep.subr.mxu0 0.0
    %850 = vmatpush1.msra.mxu0 %v811
    %851 = vmatprep.subr.mxu0 0.0
    %852 = vmatpush1.msra.mxu0 %v810
    %853 = vmatprep.subr.mxu0 0.0
    %854 = vmatpush1.msra.mxu0 %v809
    %855 = vmatprep.subr.mxu0 0.0
    %856 = vmatpush1.msra.mxu0 %v808
    %857 = vmatprep.subr.mxu0 0.0
    %858 = vmatpush2.msra.mxu0 0.0
    %859 = vmatprep.subr.mxu0 0.0
    %860 = vmatpush2.msra.mxu0 0.0
    %861 = vmatprep.subr.mxu0 0.0
    %862 = vmatpush2.msra.mxu0 0.0
    %863 = vmatprep.subr.mxu0 0.0
    %864 = vmatpush2.msra.mxu0 0.0
    %865 = vmatprep.subr.mxu0 0.0
    %866 = vmatpush2.msra.mxu0 0.0
    %867 = vmatprep.subr.mxu0 0.0
    %868 = vmatpush2.msra.mxu0 0.0
    %869 = vmatprep.subr.mxu0 0.0
    %870 = vmatpush2.msra.mxu0 0.0
    %871 = vmatprep.subr.mxu0 0.0
    %872 = vmatpush2.msra.mxu0 0.0
    %873 = vmatprep.subr.mxu0 0.0
    %874 = vmatpush2.msra.mxu0 0.0
    %875 = vmatprep.subr.mxu0 0.0
    %876 = vmatpush2.msra.mxu0 0.0
    %877 = vmatprep.subr.mxu0 0.0
    %878 = vmatpush2.msra.mxu0 0.0
    %879 = vmatprep.subr.mxu0 0.0
    %880 = vmatpush2.msra.mxu0 0.0
    %881 = vmatprep.subr.mxu0 0.0
    %882 = vmatpush2.msra.mxu0 0.0
    %883 = vmatprep.subr.mxu0 0.0
    %884 = vmatpush2.msra.mxu0 0.0
    %885 = vmatprep.subr.mxu0 0.0
    %886 = vmatpush2.msra.mxu0 0.0
    %887 = vmatprep.subr.mxu0 0.0
    %888 = vmatpush2.msra.mxu0 0.0
    %889 = vmatprep.mubr.f32.mxu0 0.0
    %890 = vmatmul.mubr.f32.gmra.mxu0 %v820
    %v891 = vpop.f32.mrf.mxu0
    %v892 = vadd.f32 %v817, %v891
    %v893 = vpop.f32.mrf.mxu0
    %894 = vmatprep.mubr.f32.mxu0 0.0
    %895 = vmatmul.mubr.f32.gmra.mxu0 %v823
    %v896 = vpop.f32.mrf.mxu0
    %v897 = vadd.f32 %v817, %v896
    %v898 = vpop.f32.mrf.mxu0
    %899 = vdwg.mxu0
    %v900 = vld [vmem:[%s7] sm:$0xff]
    %v901 = vld [vmem:[%s7 + $0x8] sm:$0xff]
    %v902 = vld [vmem:[%s7 + $0x10] sm:$0xff]
    %v903 = vld [vmem:[%s7 + $0x18] sm:$0xff]
    %v904 = vld [vmem:[%s1] sm:$0x3]
    %v905 = vld [vmem:[%s9] sm:$0x3]
    %v906 = vld [vmem:[%s10] sm:$0x3]
    %v908 = vsel %vm450, %v905, 0
    %910 = vmatprep.subr.mxu0 0.0
    %911 = vmatpush1.msra.mxu0 0.0
    %912 = vmatprep.subr.mxu0 0.0
    %913 = vmatpush1.msra.mxu0 0.0
    %914 = vmatprep.subr.mxu0 0.0
    %915 = vmatpush1.msra.mxu0 0.0
    %916 = vmatprep.subr.mxu0 0.0
    %917 = vmatpush1.msra.mxu0 0.0
    %918 = vmatprep.subr.mxu0 0.0
    %919 = vmatpush1.msra.mxu0 0.0
    %920 = vmatprep.subr.mxu0 0.0
    %921 = vmatpush1.msra.mxu0 0.0
    %922 = vmatprep.subr.mxu0 0.0
    %923 = vmatpush1.msra.mxu0 0.0
    %924 = vmatprep.subr.mxu0 0.0
    %925 = vmatpush1.msra.mxu0 0.0
    %926 = vmatprep.subr.mxu0 0.0
    %927 = vmatpush1.msra.mxu0 0.0
    %928 = vmatprep.subr.mxu0 0.0
    %929 = vmatpush1.msra.mxu0 0.0
    %930 = vmatprep.subr.mxu0 0.0
    %931 = vmatpush1.msra.mxu0 0.0
    %932 = vmatprep.subr.mxu0 0.0
    %933 = vmatpush1.msra.mxu0 0.0
    %934 = vmatprep.subr.mxu0 0.0
    %935 = vmatpush1.msra.mxu0 %v903
    %936 = vmatprep.subr.mxu0 0.0
    %937 = vmatpush1.msra.mxu0 %v902
    %938 = vmatprep.subr.mxu0 0.0
    %939 = vmatpush1.msra.mxu0 %v901
    %940 = vmatprep.subr.mxu0 0.0
    %941 = vmatpush1.msra.mxu0 %v900
    %942 = vmatprep.subr.mxu0 0.0
    %943 = vmatpush2.msra.mxu0 0.0
    %944 = vmatprep.subr.mxu0 0.0
    %945 = vmatpush2.msra.mxu0 0.0
    %946 = vmatprep.subr.mxu0 0.0
    %947 = vmatpush2.msra.mxu0 0.0
    %948 = vmatprep.subr.mxu0 0.0
    %949 = vmatpush2.msra.mxu0 0.0
    %950 = vmatprep.subr.mxu0 0.0
    %951 = vmatpush2.msra.mxu0 0.0
    %952 = vmatprep.subr.mxu0 0.0
    %953 = vmatpush2.msra.mxu0 0.0
    %954 = vmatprep.subr.mxu0 0.0
    %955 = vmatpush2.msra.mxu0 0.0
    %956 = vmatprep.subr.mxu0 0.0
    %957 = vmatpush2.msra.mxu0 0.0
    %958 = vmatprep.subr.mxu0 0.0
    %959 = vmatpush2.msra.mxu0 0.0
    %960 = vmatprep.subr.mxu0 0.0
    %961 = vmatpush2.msra.mxu0 0.0
    %962 = vmatprep.subr.mxu0 0.0
    %963 = vmatpush2.msra.mxu0 0.0
    %964 = vmatprep.subr.mxu0 0.0
    %965 = vmatpush2.msra.mxu0 0.0
    %966 = vmatprep.subr.mxu0 0.0
    %967 = vmatpush2.msra.mxu0 0.0
    %968 = vmatprep.subr.mxu0 0.0
    %969 = vmatpush2.msra.mxu0 0.0
    %970 = vmatprep.subr.mxu0 0.0
    %971 = vmatpush2.msra.mxu0 0.0
    %972 = vmatprep.subr.mxu0 0.0
    %973 = vmatpush2.msra.mxu0 0.0
    %974 = vmatprep.mubr.f32.mxu0 0.0
    %975 = vmatmul.mubr.f32.gmra.mxu0 %v908
    %v976 = vpop.f32.mrf.mxu0
    %v977 = vadd.f32 0.0, %v976
    %v978 = vpop.f32.mrf.mxu0
    %979 = vdwg.mxu0
    %v980 = vadd.f32 %v892, %v977
    %v981 = vxor.u32 %v980, 2147483648
    %v982 = vmul.f32 %v981, 1.442695
    %v983 = vpow.pop %v982
    %v984 = vadd.f32 %v983, 1.0
    %v985 = vrcp.pop %v984
    %v986 = vmul.f32 1.0, %v985
    %v987 = vtanh.pop %v980
    %989 = vrot.lane.b32.xlu0 %v906, 32
    %v990 = vpop.permute.xlu0 %989
    %v992 = vmul.f32 %v986, %v990
    %994 = vrot.lane.b32.xlu0 %v987, 64
    %v995 = vpop.permute.xlu0 %994
    %v997 = vmul.f32 %v986, %v995
    %999 = vrot.lane.b32.xlu0 %v997, 32
    %v1000 = vpop.permute.xlu0 %999
    %v1002 = vadd.f32 %v992, %v1000
    %v1003 = vtanh.pop %v1002
    %1005 = vrot.lane.b32.xlu0 %v1003, 64
    %v1006 = vpop.permute.xlu0 %1005
    %v1008 = vmul.f32 %v986, %v1006
    %vm1009 = vcmp.gt.s32.totalorder %v904, 0
    %v1010 = vsel %vm1009, 1, 0
    %1011 = vset.pattern.permute.xlu0 0
    %1012 = vperm.xlu0 %1011, %v1010
    %v1013 = vpop.permute.xlu0 %1012
    %vm1014 = vcmp.eq.s32.totalorder %v1013, 1
    %1015 = vrot.lane.b32.xlu0 %v905, 96
    %v1016 = vpop.permute.xlu0 %1015
    %v1018 = vsel %vm1014, %v1008, %v1016
    %v1019 = vsel %vm1014, %v1002, %v990
    %1021 = vrot.lane.b32.xlu0 %v1018, 32
    %v1022 = vpop.permute.xlu0 %1021
    %v1023 = vsel %vm450, %v1022, 0
    %1025 = vmatprep.subr.mxu0 0.0
    %1026 = vmatpush1.msra.mxu0 0.0
    %1027 = vmatprep.subr.mxu0 0.0
    %1028 = vmatpush1.msra.mxu0 0.0
    %1029 = vmatprep.subr.mxu0 0.0
    %1030 = vmatpush1.msra.mxu0 0.0
    %1031 = vmatprep.subr.mxu0 0.0
    %1032 = vmatpush1.msra.mxu0 0.0
    %1033 = vmatprep.subr.mxu0 0.0
    %1034 = vmatpush1.msra.mxu0 0.0
    %1035 = vmatprep.subr.mxu0 0.0
    %1036 = vmatpush1.msra.mxu0 0.0
    %1037 = vmatprep.subr.mxu0 0.0
    %1038 = vmatpush1.msra.mxu0 0.0
    %1039 = vmatprep.subr.mxu0 0.0
    %1040 = vmatpush1.msra.mxu0 0.0
    %1041 = vmatprep.subr.mxu0 0.0
    %1042 = vmatpush1.msra.mxu0 0.0
    %1043 = vmatprep.subr.mxu0 0.0
    %1044 = vmatpush1.msra.mxu0 0.0
    %1045 = vmatprep.subr.mxu0 0.0
    %1046 = vmatpush1.msra.mxu0 0.0
    %1047 = vmatprep.subr.mxu0 0.0
    %1048 = vmatpush1.msra.mxu0 0.0
    %1049 = vmatprep.subr.mxu0 0.0
    %1050 = vmatpush1.msra.mxu0 %v903
    %1051 = vmatprep.subr.mxu0 0.0
    %1052 = vmatpush1.msra.mxu0 %v902
    %1053 = vmatprep.subr.mxu0 0.0
    %1054 = vmatpush1.msra.mxu0 %v901
    %1055 = vmatprep.subr.mxu0 0.0
    %1056 = vmatpush1.msra.mxu0 %v900
    %1057 = vmatprep.subr.mxu0 0.0
    %1058 = vmatpush2.msra.mxu0 0.0
    %1059 = vmatprep.subr.mxu0 0.0
    %1060 = vmatpush2.msra.mxu0 0.0
    %1061 = vmatprep.subr.mxu0 0.0
    %1062 = vmatpush2.msra.mxu0 0.0
    %1063 = vmatprep.subr.mxu0 0.0
    %1064 = vmatpush2.msra.mxu0 0.0
    %1065 = vmatprep.subr.mxu0 0.0
    %1066 = vmatpush2.msra.mxu0 0.0
    %1067 = vmatprep.subr.mxu0 0.0
    %1068 = vmatpush2.msra.mxu0 0.0
    %1069 = vmatprep.subr.mxu0 0.0
    %1070 = vmatpush2.msra.mxu0 0.0
    %1071 = vmatprep.subr.mxu0 0.0
    %1072 = vmatpush2.msra.mxu0 0.0
    %1073 = vmatprep.subr.mxu0 0.0
    %1074 = vmatpush2.msra.mxu0 0.0
    %1075 = vmatprep.subr.mxu0 0.0
    %1076 = vmatpush2.msra.mxu0 0.0
    %1077 = vmatprep.subr.mxu0 0.0
    %1078 = vmatpush2.msra.mxu0 0.0
    %1079 = vmatprep.subr.mxu0 0.0
    %1080 = vmatpush2.msra.mxu0 0.0
    %1081 = vmatprep.subr.mxu0 0.0
    %1082 = vmatpush2.msra.mxu0 0.0
    %1083 = vmatprep.subr.mxu0 0.0
    %1084 = vmatpush2.msra.mxu0 0.0
    %1085 = vmatprep.subr.mxu0 0.0
    %1086 = vmatpush2.msra.mxu0 0.0
    %1087 = vmatprep.subr.mxu0 0.0
    %1088 = vmatpush2.msra.mxu0 0.0
    %1089 = vmatprep.mubr.f32.mxu0 0.0
    %1090 = vmatmul.mubr.f32.gmra.mxu0 %v1023
    %v1091 = vpop.f32.mrf.mxu0
    %v1092 = vadd.f32 0.0, %v1091
    %v1093 = vpop.f32.mrf.mxu0
    %1094 = vdwg.mxu0
    %v1096 = vrot.slane %v1092, 6
    %v1098 = vadd.f32 %v892, %v1096
    %v1099 = vxor.u32 %v1098, 2147483648
    %v1100 = vmul.f32 %v1099, 1.442695
    %v1101 = vpow.pop %v1100
    %v1102 = vadd.f32 %v1101, 1.0
    %v1103 = vrcp.pop %v1102
    %v1104 = vmul.f32 1.0, %v1103
    %v1105 = vtanh.pop %v1098
    %v1107 = vrot.slane %v1019, 6
    %v1109 = vmul.f32 %v1104, %v1107
    %1111 = vrot.lane.b32.xlu0 %v1105, 64
    %v1112 = vpop.permute.xlu0 %1111
    %v1114 = vmul.f32 %v1104, %v1112
    %1116 = vrot.lane.b32.xlu0 %v1114, 32
    %v1117 = vpop.permute.xlu0 %1116
    %v1119 = vadd.f32 %v1109, %v1117
    %v1120 = vtanh.pop %v1119
    %1122 = vrot.lane.b32.xlu0 %v1120, 64
    %v1123 = vpop.permute.xlu0 %1122
    %v1125 = vmul.f32 %v1104, %v1123
    %vm1126 = vcmp.gt.s32.totalorder %v904, 1
    %v1127 = vsel %vm1126, 1, 0
    %1128 = vset.pattern.permute.xlu0 0
    %1129 = vperm.xlu0 %1128, %v1127
    %v1130 = vpop.permute.xlu0 %1129
    %vm1131 = vcmp.eq.s32.totalorder %v1130, 1
    %v1133 = vrot.slane %v1125, 2
    %1134 = vrot.lane.b32.xlu0 %v1133, 32
    %v1135 = vpop.permute.xlu0 %1134
    %v1138 = vsel %vm1131, %v1135, %v1022
    %v1140 = vrot.slane %v1119, 2
    %1141 = vrot.lane.b32.xlu0 %v1140, 96
    %v1142 = vpop.permute.xlu0 %1141
    %1144 = vrot.lane.b32.xlu0 %v1019, 96
    %v1145 = vpop.permute.xlu0 %1144
    %v1147 = vsel %vm1131, %v1142, %v1145
    %v1149 = vsel %vm450, %v1138, 0
    %1151 = vmatprep.subr.mxu0 0.0
    %1152 = vmatpush1.msra.mxu0 0.0
    %1153 = vmatprep.subr.mxu0 0.0
    %1154 = vmatpush1.msra.mxu0 0.0
    %1155 = vmatprep.subr.mxu0 0.0
    %1156 = vmatpush1.msra.mxu0 0.0
    %1157 = vmatprep.subr.mxu0 0.0
    %1158 = vmatpush1.msra.mxu0 0.0
    %1159 = vmatprep.subr.mxu0 0.0
    %1160 = vmatpush1.msra.mxu0 0.0
    %1161 = vmatprep.subr.mxu0 0.0
    %1162 = vmatpush1.msra.mxu0 0.0
    %1163 = vmatprep.subr.mxu0 0.0
    %1164 = vmatpush1.msra.mxu0 0.0
    %1165 = vmatprep.subr.mxu0 0.0
    %1166 = vmatpush1.msra.mxu0 0.0
    %1167 = vmatprep.subr.mxu0 0.0
    %1168 = vmatpush1.msra.mxu0 0.0
    %1169 = vmatprep.subr.mxu0 0.0
    %1170 = vmatpush1.msra.mxu0 0.0
    %1171 = vmatprep.subr.mxu0 0.0
    %1172 = vmatpush1.msra.mxu0 0.0
    %1173 = vmatprep.subr.mxu0 0.0
    %1174 = vmatpush1.msra.mxu0 0.0
    %1175 = vmatprep.subr.mxu0 0.0
    %1176 = vmatpush1.msra.mxu0 %v903
    %1177 = vmatprep.subr.mxu0 0.0
    %1178 = vmatpush1.msra.mxu0 %v902
    %1179 = vmatprep.subr.mxu0 0.0
    %1180 = vmatpush1.msra.mxu0 %v901
    %1181 = vmatprep.subr.mxu0 0.0
    %1182 = vmatpush1.msra.mxu0 %v900
    %1183 = vmatprep.subr.mxu0 0.0
    %1184 = vmatpush2.msra.mxu0 0.0
    %1185 = vmatprep.subr.mxu0 0.0
    %1186 = vmatpush2.msra.mxu0 0.0
    %1187 = vmatprep.subr.mxu0 0.0
    %1188 = vmatpush2.msra.mxu0 0.0
    %1189 = vmatprep.subr.mxu0 0.0
    %1190 = vmatpush2.msra.mxu0 0.0
    %1191 = vmatprep.subr.mxu0 0.0
    %1192 = vmatpush2.msra.mxu0 0.0
    %1193 = vmatprep.subr.mxu0 0.0
    %1194 = vmatpush2.msra.mxu0 0.0
    %1195 = vmatprep.subr.mxu0 0.0
    %1196 = vmatpush2.msra.mxu0 0.0
    %1197 = vmatprep.subr.mxu0 0.0
    %1198 = vmatpush2.msra.mxu0 0.0
    %1199 = vmatprep.subr.mxu0 0.0
    %1200 = vmatpush2.msra.mxu0 0.0
    %1201 = vmatprep.subr.mxu0 0.0
    %1202 = vmatpush2.msra.mxu0 0.0
    %1203 = vmatprep.subr.mxu0 0.0
    %1204 = vmatpush2.msra.mxu0 0.0
    %1205 = vmatprep.subr.mxu0 0.0
    %1206 = vmatpush2.msra.mxu0 0.0
    %1207 = vmatprep.subr.mxu0 0.0
    %1208 = vmatpush2.msra.mxu0 0.0
    %1209 = vmatprep.subr.mxu0 0.0
    %1210 = vmatpush2.msra.mxu0 0.0
    %1211 = vmatprep.subr.mxu0 0.0
    %1212 = vmatpush2.msra.mxu0 0.0
    %1213 = vmatprep.subr.mxu0 0.0
    %1214 = vmatpush2.msra.mxu0 0.0
    %1215 = vmatprep.mubr.f32.mxu0 0.0
    %1216 = vmatmul.mubr.f32.gmra.mxu0 %v1149
    %v1217 = vpop.f32.mrf.mxu0
    %v1218 = vadd.f32 0.0, %v1217
    %v1219 = vpop.f32.mrf.mxu0
    %1220 = vdwg.mxu0
    %v1222 = vrot.slane %v1218, 4
    %v1224 = vadd.f32 %v892, %v1222
    %v1225 = vxor.u32 %v1224, 2147483648
    %v1226 = vmul.f32 %v1225, 1.442695
    %v1227 = vpow.pop %v1226
    %v1228 = vadd.f32 %v1227, 1.0
    %v1229 = vrcp.pop %v1228
    %v1230 = vmul.f32 1.0, %v1229
    %v1231 = vtanh.pop %v1224
    %v1233 = vrot.slane %v1147, 4
    %1234 = vrot.lane.b32.xlu0 %v1233, 32
    %v1235 = vpop.permute.xlu0 %1234
    %v1237 = vmul.f32 %v1230, %v1235
    %1239 = vrot.lane.b32.xlu0 %v1231, 64
    %v1240 = vpop.permute.xlu0 %1239
    %v1242 = vmul.f32 %v1230, %v1240
    %1244 = vrot.lane.b32.xlu0 %v1242, 32
    %v1245 = vpop.permute.xlu0 %1244
    %v1247 = vadd.f32 %v1237, %v1245
    %v1248 = vtanh.pop %v1247
    %1250 = vrot.lane.b32.xlu0 %v1248, 64
    %v1251 = vpop.permute.xlu0 %1250
    %v1253 = vmul.f32 %v1230, %v1251
    %vm1254 = vcmp.gt.s32.totalorder %v904, 2
    %v1255 = vsel %vm1254, 1, 0
    %1256 = vset.pattern.permute.xlu0 0
    %1257 = vperm.xlu0 %1256, %v1255
    %v1258 = vpop.permute.xlu0 %1257
    %vm1259 = vcmp.eq.s32.totalorder %v1258, 1
    %v1261 = vrot.slane %v1253, 4
    %1262 = vrot.lane.b32.xlu0 %v1261, 32
    %v1263 = vpop.permute.xlu0 %1262
    %v1265 = vsel %vm1259, %v1263, %v1138
    %v1267 = vrot.slane %v1247, 4
    %1268 = vrot.lane.b32.xlu0 %v1267, 96
    %v1269 = vpop.permute.xlu0 %1268
    %v1271 = vsel %vm1259, %v1269, %v1147
    %v1273 = vsel %vm450, %v1265, 0
    %1275 = vmatprep.subr.mxu0 0.0
    %1276 = vmatpush1.msra.mxu0 0.0
    %1277 = vmatprep.subr.mxu0 0.0
    %1278 = vmatpush1.msra.mxu0 0.0
    %1279 = vmatprep.subr.mxu0 0.0
    %1280 = vmatpush1.msra.mxu0 0.0
    %1281 = vmatprep.subr.mxu0 0.0
    %1282 = vmatpush1.msra.mxu0 0.0
    %1283 = vmatprep.subr.mxu0 0.0
    %1284 = vmatpush1.msra.mxu0 0.0
    %1285 = vmatprep.subr.mxu0 0.0
    %1286 = vmatpush1.msra.mxu0 0.0
    %1287 = vmatprep.subr.mxu0 0.0
    %1288 = vmatpush1.msra.mxu0 0.0
    %1289 = vmatprep.subr.mxu0 0.0
    %1290 = vmatpush1.msra.mxu0 0.0
    %1291 = vmatprep.subr.mxu0 0.0
    %1292 = vmatpush1.msra.mxu0 0.0
    %1293 = vmatprep.subr.mxu0 0.0
    %1294 = vmatpush1.msra.mxu0 0.0
    %1295 = vmatprep.subr.mxu0 0.0
    %1296 = vmatpush1.msra.mxu0 0.0
    %1297 = vmatprep.subr.mxu0 0.0
    %1298 = vmatpush1.msra.mxu0 0.0
    %1299 = vmatprep.subr.mxu0 0.0
    %1300 = vmatpush1.msra.mxu0 %v903
    %1301 = vmatprep.subr.mxu0 0.0
    %1302 = vmatpush1.msra.mxu0 %v902
    %1303 = vmatprep.subr.mxu0 0.0
    %1304 = vmatpush1.msra.mxu0 %v901
    %1305 = vmatprep.subr.mxu0 0.0
    %1306 = vmatpush1.msra.mxu0 %v900
    %1307 = vmatprep.subr.mxu0 0.0
    %1308 = vmatpush2.msra.mxu0 0.0
    %1309 = vmatprep.subr.mxu0 0.0
    %1310 = vmatpush2.msra.mxu0 0.0
    %1311 = vmatprep.subr.mxu0 0.0
    %1312 = vmatpush2.msra.mxu0 0.0
    %1313 = vmatprep.subr.mxu0 0.0
    %1314 = vmatpush2.msra.mxu0 0.0
    %1315 = vmatprep.subr.mxu0 0.0
    %1316 = vmatpush2.msra.mxu0 0.0
    %1317 = vmatprep.subr.mxu0 0.0
    %1318 = vmatpush2.msra.mxu0 0.0
    %1319 = vmatprep.subr.mxu0 0.0
    %1320 = vmatpush2.msra.mxu0 0.0
    %1321 = vmatprep.subr.mxu0 0.0
    %1322 = vmatpush2.msra.mxu0 0.0
    %1323 = vmatprep.subr.mxu0 0.0
    %1324 = vmatpush2.msra.mxu0 0.0
    %1325 = vmatprep.subr.mxu0 0.0
    %1326 = vmatpush2.msra.mxu0 0.0
    %1327 = vmatprep.subr.mxu0 0.0
    %1328 = vmatpush2.msra.mxu0 0.0
    %1329 = vmatprep.subr.mxu0 0.0
    %1330 = vmatpush2.msra.mxu0 0.0
    %1331 = vmatprep.subr.mxu0 0.0
    %1332 = vmatpush2.msra.mxu0 0.0
    %1333 = vmatprep.subr.mxu0 0.0
    %1334 = vmatpush2.msra.mxu0 0.0
    %1335 = vmatprep.subr.mxu0 0.0
    %1336 = vmatpush2.msra.mxu0 0.0
    %1337 = vmatprep.subr.mxu0 0.0
    %1338 = vmatpush2.msra.mxu0 0.0
    %1339 = vmatprep.mubr.f32.mxu0 0.0
    %1340 = vmatmul.mubr.f32.gmra.mxu0 %v1273
    %v1341 = vpop.f32.mrf.mxu0
    %v1342 = vadd.f32 0.0, %v1341
    %v1343 = vpop.f32.mrf.mxu0
    %1344 = vdwg.mxu0
    %v1346 = vrot.slane %v1342, 2
    %v1348 = vadd.f32 %v892, %v1346
    %v1349 = vxor.u32 %v1348, 2147483648
    %v1350 = vmul.f32 %v1349, 1.442695
    %v1351 = vpow.pop %v1350
    %v1352 = vadd.f32 %v1351, 1.0
    %v1353 = vrcp.pop %v1352
    %v1354 = vmul.f32 1.0, %v1353
    %v1355 = vtanh.pop %v1348
    %v1357 = vrot.slane %v1271, 2
    %1358 = vrot.lane.b32.xlu0 %v1357, 32
    %v1359 = vpop.permute.xlu0 %1358
    %v1361 = vmul.f32 %v1354, %v1359
    %1363 = vrot.lane.b32.xlu0 %v1355, 64
    %v1364 = vpop.permute.xlu0 %1363
    %v1366 = vmul.f32 %v1354, %v1364
    %1368 = vrot.lane.b32.xlu0 %v1366, 32
    %v1369 = vpop.permute.xlu0 %1368
    %v1371 = vadd.f32 %v1361, %v1369
    %v1372 = vtanh.pop %v1371
    %1374 = vrot.lane.b32.xlu0 %v1372, 64
    %v1375 = vpop.permute.xlu0 %1374
    %v1377 = vmul.f32 %v1354, %v1375
    %vm1378 = vcmp.gt.s32.totalorder %v904, 3
    %v1379 = vsel %vm1378, 1, 0
    %1380 = vset.pattern.permute.xlu0 0
    %1381 = vperm.xlu0 %1380, %v1379
    %v1382 = vpop.permute.xlu0 %1381
    %vm1383 = vcmp.eq.s32.totalorder %v1382, 1
    %v1385 = vrot.slane %v1377, 6
    %1386 = vrot.lane.b32.xlu0 %v1385, 32
    %v1387 = vpop.permute.xlu0 %1386
    %v1389 = vsel %vm1383, %v1387, %v1265
    %v1391 = vrot.slane %v1371, 6
    %1392 = vrot.lane.b32.xlu0 %v1391, 96
    %v1393 = vpop.permute.xlu0 %1392
    %v1395 = vsel %vm1383, %v1393, %v1271
    %v1397 = vsel %vm450, %v1389, 0
    %1399 = vmatprep.subr.mxu0 0.0
    %1400 = vmatpush1.msra.mxu0 0.0
    %1401 = vmatprep.subr.mxu0 0.0
    %1402 = vmatpush1.msra.mxu0 0.0
    %1403 = vmatprep.subr.mxu0 0.0
    %1404 = vmatpush1.msra.mxu0 0.0
    %1405 = vmatprep.subr.mxu0 0.0
    %1406 = vmatpush1.msra.mxu0 0.0
    %1407 = vmatprep.subr.mxu0 0.0
    %1408 = vmatpush1.msra.mxu0 0.0
    %1409 = vmatprep.subr.mxu0 0.0
    %1410 = vmatpush1.msra.mxu0 0.0
    %1411 = vmatprep.subr.mxu0 0.0
    %1412 = vmatpush1.msra.mxu0 0.0
    %1413 = vmatprep.subr.mxu0 0.0
    %1414 = vmatpush1.msra.mxu0 0.0
    %1415 = vmatprep.subr.mxu0 0.0
    %1416 = vmatpush1.msra.mxu0 0.0
    %1417 = vmatprep.subr.mxu0 0.0
    %1418 = vmatpush1.msra.mxu0 0.0
    %1419 = vmatprep.subr.mxu0 0.0
    %1420 = vmatpush1.msra.mxu0 0.0
    %1421 = vmatprep.subr.mxu0 0.0
    %1422 = vmatpush1.msra.mxu0 0.0
    %1423 = vmatprep.subr.mxu0 0.0
    %1424 = vmatpush1.msra.mxu0 %v903
    %1425 = vmatprep.subr.mxu0 0.0
    %1426 = vmatpush1.msra.mxu0 %v902
    %1427 = vmatprep.subr.mxu0 0.0
    %1428 = vmatpush1.msra.mxu0 %v901
    %1429 = vmatprep.subr.mxu0 0.0
    %1430 = vmatpush1.msra.mxu0 %v900
    %1431 = vmatprep.subr.mxu0 0.0
    %1432 = vmatpush2.msra.mxu0 0.0
    %1433 = vmatprep.subr.mxu0 0.0
    %1434 = vmatpush2.msra.mxu0 0.0
    %1435 = vmatprep.subr.mxu0 0.0
    %1436 = vmatpush2.msra.mxu0 0.0
    %1437 = vmatprep.subr.mxu0 0.0
    %1438 = vmatpush2.msra.mxu0 0.0
    %1439 = vmatprep.subr.mxu0 0.0
    %1440 = vmatpush2.msra.mxu0 0.0
    %1441 = vmatprep.subr.mxu0 0.0
    %1442 = vmatpush2.msra.mxu0 0.0
    %1443 = vmatprep.subr.mxu0 0.0
    %1444 = vmatpush2.msra.mxu0 0.0
    %1445 = vmatprep.subr.mxu0 0.0
    %1446 = vmatpush2.msra.mxu0 0.0
    %1447 = vmatprep.subr.mxu0 0.0
    %1448 = vmatpush2.msra.mxu0 0.0
    %1449 = vmatprep.subr.mxu0 0.0
    %1450 = vmatpush2.msra.mxu0 0.0
    %1451 = vmatprep.subr.mxu0 0.0
    %1452 = vmatpush2.msra.mxu0 0.0
    %1453 = vmatprep.subr.mxu0 0.0
    %1454 = vmatpush2.msra.mxu0 0.0
    %1455 = vmatprep.subr.mxu0 0.0
    %1456 = vmatpush2.msra.mxu0 0.0
    %1457 = vmatprep.subr.mxu0 0.0
    %1458 = vmatpush2.msra.mxu0 0.0
    %1459 = vmatprep.subr.mxu0 0.0
    %1460 = vmatpush2.msra.mxu0 0.0
    %1461 = vmatprep.subr.mxu0 0.0
    %1462 = vmatpush2.msra.mxu0 0.0
    %1463 = vmatprep.mubr.f32.mxu0 0.0
    %1464 = vmatmul.mubr.f32.gmra.mxu0 %v1397
    %v1465 = vpop.f32.mrf.mxu0
    %v1466 = vadd.f32 0.0, %v1465
    %v1467 = vpop.f32.mrf.mxu0
    %1468 = vdwg.mxu0
    %v1469 = vadd.f32 %v897, %v1466
    %v1470 = vxor.u32 %v1469, 2147483648
    %v1471 = vmul.f32 %v1470, 1.442695
    %v1472 = vpow.pop %v1471
    %v1473 = vadd.f32 %v1472, 1.0
    %v1474 = vrcp.pop %v1473
    %v1475 = vmul.f32 1.0, %v1474
    %v1476 = vtanh.pop %v1469
    %1478 = vrot.lane.b32.xlu0 %v1395, 32
    %v1479 = vpop.permute.xlu0 %1478
    %v1481 = vmul.f32 %v1475, %v1479
    %1483 = vrot.lane.b32.xlu0 %v1476, 64
    %v1484 = vpop.permute.xlu0 %1483
    %v1486 = vmul.f32 %v1475, %v1484
    %1488 = vrot.lane.b32.xlu0 %v1486, 32
    %v1489 = vpop.permute.xlu0 %1488
    %v1491 = vadd.f32 %v1481, %v1489
    %v1492 = vtanh.pop %v1491
    %1494 = vrot.lane.b32.xlu0 %v1492, 64
    %v1495 = vpop.permute.xlu0 %1494
    %v1497 = vmul.f32 %v1475, %v1495
    %vm1498 = vcmp.gt.s32.totalorder %v904, 4
    %v1499 = vsel %vm1498, 1, 0
    %1500 = vset.pattern.permute.xlu0 0
    %1501 = vperm.xlu0 %1500, %v1499
    %v1502 = vpop.permute.xlu0 %1501
    %vm1503 = vcmp.eq.s32.totalorder %v1502, 1
    %1504 = vrot.lane.b32.xlu0 %v1389, 96
    %v1505 = vpop.permute.xlu0 %1504
    %v1507 = vsel %vm1503, %v1497, %v1505
    %v1508 = vsel %vm1503, %v1491, %v1479
    %1510 = vrot.lane.b32.xlu0 %v1507, 32
    %v1511 = vpop.permute.xlu0 %1510
    %v1512 = vsel %vm450, %v1511, 0
    %1514 = vmatprep.subr.mxu0 0.0
    %1515 = vmatpush1.msra.mxu0 0.0
    %1516 = vmatprep.subr.mxu0 0.0
    %1517 = vmatpush1.msra.mxu0 0.0
    %1518 = vmatprep.subr.mxu0 0.0
    %1519 = vmatpush1.msra.mxu0 0.0
    %1520 = vmatprep.subr.mxu0 0.0
    %1521 = vmatpush1.msra.mxu0 0.0
    %1522 = vmatprep.subr.mxu0 0.0
    %1523 = vmatpush1.msra.mxu0 0.0
    %1524 = vmatprep.subr.mxu0 0.0
    %1525 = vmatpush1.msra.mxu0 0.0
    %1526 = vmatprep.subr.mxu0 0.0
    %1527 = vmatpush1.msra.mxu0 0.0
    %1528 = vmatprep.subr.mxu0 0.0
    %1529 = vmatpush1.msra.mxu0 0.0
    %1530 = vmatprep.subr.mxu0 0.0
    %1531 = vmatpush1.msra.mxu0 0.0
    %1532 = vmatprep.subr.mxu0 0.0
    %1533 = vmatpush1.msra.mxu0 0.0
    %1534 = vmatprep.subr.mxu0 0.0
    %1535 = vmatpush1.msra.mxu0 0.0
    %1536 = vmatprep.subr.mxu0 0.0
    %1537 = vmatpush1.msra.mxu0 0.0
    %1538 = vmatprep.subr.mxu0 0.0
    %1539 = vmatpush1.msra.mxu0 %v903
    %1540 = vmatprep.subr.mxu0 0.0
    %1541 = vmatpush1.msra.mxu0 %v902
    %1542 = vmatprep.subr.mxu0 0.0
    %1543 = vmatpush1.msra.mxu0 %v901
    %1544 = vmatprep.subr.mxu0 0.0
    %1545 = vmatpush1.msra.mxu0 %v900
    %1546 = vmatprep.subr.mxu0 0.0
    %1547 = vmatpush2.msra.mxu0 0.0
    %1548 = vmatprep.subr.mxu0 0.0
    %1549 = vmatpush2.msra.mxu0 0.0
    %1550 = vmatprep.subr.mxu0 0.0
    %1551 = vmatpush2.msra.mxu0 0.0
    %1552 = vmatprep.subr.mxu0 0.0
    %1553 = vmatpush2.msra.mxu0 0.0
    %1554 = vmatprep.subr.mxu0 0.0
    %1555 = vmatpush2.msra.mxu0 0.0
    %1556 = vmatprep.subr.mxu0 0.0
    %1557 = vmatpush2.msra.mxu0 0.0
    %1558 = vmatprep.subr.mxu0 0.0
    %1559 = vmatpush2.msra.mxu0 0.0
    %1560 = vmatprep.subr.mxu0 0.0
    %1561 = vmatpush2.msra.mxu0 0.0
    %1562 = vmatprep.subr.mxu0 0.0
    %1563 = vmatpush2.msra.mxu0 0.0
    %1564 = vmatprep.subr.mxu0 0.0
    %1565 = vmatpush2.msra.mxu0 0.0
    %1566 = vmatprep.subr.mxu0 0.0
    %1567 = vmatpush2.msra.mxu0 0.0
    %1568 = vmatprep.subr.mxu0 0.0
    %1569 = vmatpush2.msra.mxu0 0.0
    %1570 = vmatprep.subr.mxu0 0.0
    %1571 = vmatpush2.msra.mxu0 0.0
    %1572 = vmatprep.subr.mxu0 0.0
    %1573 = vmatpush2.msra.mxu0 0.0
    %1574 = vmatprep.subr.mxu0 0.0
    %1575 = vmatpush2.msra.mxu0 0.0
    %1576 = vmatprep.subr.mxu0 0.0
    %1577 = vmatpush2.msra.mxu0 0.0
    %1578 = vmatprep.mubr.f32.mxu0 0.0
    %1579 = vmatmul.mubr.f32.gmra.mxu0 %v1512
    %v1580 = vpop.f32.mrf.mxu0
    %v1581 = vadd.f32 0.0, %v1580
    %v1582 = vpop.f32.mrf.mxu0
    %1583 = vdwg.mxu0
    %v1585 = vrot.slane %v1581, 6
    %v1587 = vadd.f32 %v897, %v1585
    %v1588 = vxor.u32 %v1587, 2147483648
    %v1589 = vmul.f32 %v1588, 1.442695
    %v1590 = vpow.pop %v1589
    %v1591 = vadd.f32 %v1590, 1.0
    %v1592 = vrcp.pop %v1591
    %v1593 = vmul.f32 1.0, %v1592
    %v1594 = vtanh.pop %v1587
    %v1596 = vrot.slane %v1508, 6
    %v1598 = vmul.f32 %v1593, %v1596
    %1600 = vrot.lane.b32.xlu0 %v1594, 64
    %v1601 = vpop.permute.xlu0 %1600
    %v1603 = vmul.f32 %v1593, %v1601
    %1605 = vrot.lane.b32.xlu0 %v1603, 32
    %v1606 = vpop.permute.xlu0 %1605
    %v1608 = vadd.f32 %v1598, %v1606
    %v1609 = vtanh.pop %v1608
    %1611 = vrot.lane.b32.xlu0 %v1609, 64
    %v1612 = vpop.permute.xlu0 %1611
    %v1614 = vmul.f32 %v1593, %v1612
    %vm1615 = vcmp.gt.s32.totalorder %v904, 5
    %v1616 = vsel %vm1615, 1, 0
    %1617 = vset.pattern.permute.xlu0 0
    %1618 = vperm.xlu0 %1617, %v1616
    %v1619 = vpop.permute.xlu0 %1618
    %vm1620 = vcmp.eq.s32.totalorder %v1619, 1
    %v1622 = vrot.slane %v1614, 2
    %1623 = vrot.lane.b32.xlu0 %v1622, 32
    %v1624 = vpop.permute.xlu0 %1623
    %v1627 = vsel %vm1620, %v1624, %v1511
    %v1628 = vld [vmem:[%s11] sm:$0x3]
    %vm1629 = vcmask 254976
    %v1630 = vsel %vm1629, %v1627, 0.0
    %1631 = vadd.xlane.f32.xlu0 %v1630
    %v1632 = vpop.xlane.xlu0 %1631
    %v1633 = vrcp.pop 32.0
    %v1634 = vmul.f32 %v1632, %v1633
    %v1635 = vsub.f32 %v1627, %v1634
    %v1636 = vmul.f32 %v1635, %v1635
    %v1637 = vsel %vm1629, %v1636, 0.0
    %1638 = vadd.xlane.f32.xlu0 %v1637
    %v1639 = vpop.xlane.xlu0 %1638
    %v1640 = vmul.f32 %v1639, %v1633
    %v1641 = vadd.f32 %v1640, 1e-05
    %v1642 = vrsqrt.pop %v1641
    %v1643 = vmul.f32 %v1635, %v1642
    %v1644 = vlaneseq
    %v1645 = vshrl.u32 %v1644, 7
    %v1646 = vsub.s32 0, %v1645
    %v1647 = vrot.slane %v1628, %v1646
    %v1648 = vmul.f32 %v1643, %v1647
    %v1649 = vlaneseq
    %v1650 = vshrl.u32 %v1649, 7
    %v1651 = vsub.s32 1, %v1650
    %v1652 = vrot.slane %v1628, %v1651
    %v1653 = vadd.f32 %v1648, %v1652
    %v1654 = vld [vmem:[%s12] sm:$0xff]
    %v1655 = vld [vmem:[%s12 + $0x8] sm:$0xff]
    %v1656 = vld [vmem:[%s12 + $0x10] sm:$0xff]
    %v1657 = vld [vmem:[%s12 + $0x18] sm:$0xff]
    %v1658 = vld [vmem:[%s13] sm:$0x1]
    %v1660 = vlaneseq
    %v1661 = vshrl.u32 %v1660, 7
    %v1662 = vsub.s32 0, %v1661
    %v1663 = vrot.slane %v1658, %v1662
    %v1666 = vsel %vm450, %v1653, 0
    %1668 = vmatprep.subr.mxu0 0.0
    %1669 = vmatpush1.msra.mxu0 0.0
    %1670 = vmatprep.subr.mxu0 0.0
    %1671 = vmatpush1.msra.mxu0 0.0
    %1672 = vmatprep.subr.mxu0 0.0
    %1673 = vmatpush1.msra.mxu0 0.0
    %1674 = vmatprep.subr.mxu0 0.0
    %1675 = vmatpush1.msra.mxu0 0.0
    %1676 = vmatprep.subr.mxu0 0.0
    %1677 = vmatpush1.msra.mxu0 0.0
    %1678 = vmatprep.subr.mxu0 0.0
    %1679 = vmatpush1.msra.mxu0 0.0
    %1680 = vmatprep.subr.mxu0 0.0
    %1681 = vmatpush1.msra.mxu0 0.0
    %1682 = vmatprep.subr.mxu0 0.0
    %1683 = vmatpush1.msra.mxu0 0.0
    %1684 = vmatprep.subr.mxu0 0.0
    %1685 = vmatpush1.msra.mxu0 0.0
    %1686 = vmatprep.subr.mxu0 0.0
    %1687 = vmatpush1.msra.mxu0 0.0
    %1688 = vmatprep.subr.mxu0 0.0
    %1689 = vmatpush1.msra.mxu0 0.0
    %1690 = vmatprep.subr.mxu0 0.0
    %1691 = vmatpush1.msra.mxu0 0.0
    %1692 = vmatprep.subr.mxu0 0.0
    %1693 = vmatpush1.msra.mxu0 %v1657
    %1694 = vmatprep.subr.mxu0 0.0
    %1695 = vmatpush1.msra.mxu0 %v1656
    %1696 = vmatprep.subr.mxu0 0.0
    %1697 = vmatpush1.msra.mxu0 %v1655
    %1698 = vmatprep.subr.mxu0 0.0
    %1699 = vmatpush1.msra.mxu0 %v1654
    %1700 = vmatprep.subr.mxu0 0.0
    %1701 = vmatpush2.msra.mxu0 0.0
    %1702 = vmatprep.subr.mxu0 0.0
    %1703 = vmatpush2.msra.mxu0 0.0
    %1704 = vmatprep.subr.mxu0 0.0
    %1705 = vmatpush2.msra.mxu0 0.0
    %1706 = vmatprep.subr.mxu0 0.0
    %1707 = vmatpush2.msra.mxu0 0.0
    %1708 = vmatprep.subr.mxu0 0.0
    %1709 = vmatpush2.msra.mxu0 0.0
    %1710 = vmatprep.subr.mxu0 0.0
    %1711 = vmatpush2.msra.mxu0 0.0
    %1712 = vmatprep.subr.mxu0 0.0
    %1713 = vmatpush2.msra.mxu0 0.0
    %1714 = vmatprep.subr.mxu0 0.0
    %1715 = vmatpush2.msra.mxu0 0.0
    %1716 = vmatprep.subr.mxu0 0.0
    %1717 = vmatpush2.msra.mxu0 0.0
    %1718 = vmatprep.subr.mxu0 0.0
    %1719 = vmatpush2.msra.mxu0 0.0
    %1720 = vmatprep.subr.mxu0 0.0
    %1721 = vmatpush2.msra.mxu0 0.0
    %1722 = vmatprep.subr.mxu0 0.0
    %1723 = vmatpush2.msra.mxu0 0.0
    %1724 = vmatprep.subr.mxu0 0.0
    %1725 = vmatpush2.msra.mxu0 0.0
    %1726 = vmatprep.subr.mxu0 0.0
    %1727 = vmatpush2.msra.mxu0 0.0
    %1728 = vmatprep.subr.mxu0 0.0
    %1729 = vmatpush2.msra.mxu0 0.0
    %1730 = vmatprep.subr.mxu0 0.0
    %1731 = vmatpush2.msra.mxu0 0.0
    %1732 = vmatprep.mubr.f32.mxu0 0.0
    %1733 = vmatmul.mubr.f32.gmra.mxu0 %v1666
    %v1734 = vpop.f32.mrf.mxu0
    %v1735 = vadd.f32 %v1663, %v1734
    %v1736 = vpop.f32.mrf.mxu0
    %1737 = vdwg.mxu0
    %1738 = vst [vmem:[#allocation2] sm:$0x3] %v1735
    // Predicated region
    $region58: #{_lambda_.1} parent=1 // pred_check
      _
    $region59: #{_lambda_.1} parent=1 // pred_check_branch
      %1740 = sbr.rel (0) target = $region61
    $region60: #{_lambda_.1} parent=1 // pred_region
      %s1742 = ssub.s32 32, 32
      %1743 = vsyncadd [#allocation3], %s1742
      %s1745 = sshll.u32 [#allocation2], 4
      %s1746 = int_to_ptr.vmem [resolvable:$true] %s1745
      %1748 = dma.vmem_to_hbm [thread:$0]  %s1746, 32, %s14, [#allocation3]
    $region61: #{_lambda_.1} parent=1 // pred_fallthru
      _
    // Predicated region
    $region62: #{_lambda_.1} parent=1 // pred_check
      _
    $region63: #{_lambda_.1} parent=1 // pred_check_branch
      %1750 = sbr.rel (0) target = $region65
    $region64: #{_lambda_.1} parent=1 // pred_region
      %1751 = dma.done [#allocation3], 32
    $region65: #{_lambda_.1} parent=1 // pred_fallthru
      _
    %1752 = vsyncpa [#allocation3], 1

</llo_original>
